<compile_context>
chip_gen: v6e
topology: v6e:2x2x1
jax: 0.10.0
libtpu: 0.0.40
codegen_flags: <defaults>
</compile_context>

<pallas_src>
import functools

import jax
import jax.numpy as jnp
from jax import lax
from jax.experimental import pallas as pl
from jax.experimental.pallas import tpu as pltpu

F32 = jnp.float32

HW_DIM, OC_DIM, TP_DIM, DY_DIM, HE_DIM, CA_DIM = 17, 17, 20, 13, 17, 15
FEATURE_ORDER = ('hardware', 'onchain_behavior', 'network_topology',
                 'dynamic_attributes', 'heterogeneous_type', 'categorical')
FEATURE_DIMS = (HW_DIM, OC_DIM, TP_DIM, DY_DIM, HE_DIM, CA_DIM)
HIDDEN_DIMS = (32, 32, 32, 16, 32, 24)        # first-layer widths of the 6 evaluators
X_TOT = sum(FEATURE_DIMS)                      # 99
H1_TOT = sum(HIDDEN_DIMS)                      # 168
H2_HW = 16                                     # hardware evaluator's second hidden layer
N_HEADS = 7                                    # 6 quality heads + 1 fusion head

# packed-output lane layout of the fused node kernel (per shard row):
#   [0] count | [1:5] element sums (hw,tp,dy,oc) | [5:11] row-mean sums (hw,oc,tp,dy,he,ca)
#   [11:28] hetero sums | [28:45] hetero sums of squares | [45:52] head sums (6 quality, fusion)
R_WIDTH = 1 + 10 + HE_DIM + HE_DIM + N_HEADS   # 52
GRAM_ROWS = 10
OUT_LANES = 128


def _round_up(x, m):
    return ((x + m - 1) // m) * m


# ---------------------------------------------------------------------------
# Kernel 1: fused node kernel — evaluators + fusion head + all per-shard statistics.
# ---------------------------------------------------------------------------
def _fused_node_kernel(sa_ref, hw_ref, oc_ref, tp_ref, dy_ref, he_ref, ca_ref,
                       w1_ref, b1_ref, w2_ref, b2_ref,
                       wfx_ref, wfh1_ref, wfh2_ref, b7_ref, mx_ref,
                       out_ref, acc_stats, acc_gram,
                       *, n_total, n_shards, out_rows):
    step = pl.program_id(0)

    @pl.when(step == 0)
    def _init():
        acc_stats[...] = jnp.zeros_like(acc_stats)
        acc_gram[...] = jnp.zeros_like(acc_gram)

    hw = hw_ref[...]
    oc = oc_ref[...]
    tp = tp_ref[...]
    dy = dy_ref[...]
    he = he_ref[...]
    ca = ca_ref[...]
    sa = sa_ref[...]
    tn = hw.shape[0]

    # single N x 99 slab, assembled in VMEM (never materialized in HBM)
    x_all = jnp.concatenate([hw, oc, tp, dy, he, ca], axis=1)

    # valid-row mask handles the zero-padded tail rows of the last block
    row_idx = step * tn + lax.broadcasted_iota(jnp.int32, (tn, 1), 0)
    valid = (row_idx < n_total).astype(F32)

    # hard assignment -> masked one-hot (first-max tie break == argmax semantics)
    col = lax.broadcasted_iota(jnp.int32, (tn, n_shards), 1).astype(F32)
    row_max = jnp.max(sa, axis=1, keepdims=True)
    first_max = jnp.min(jnp.where(sa >= row_max, col, float(n_shards)),
                        axis=1, keepdims=True)
    oh = (col == first_max).astype(F32) * valid                        # (tn, S)

    # all six evaluators + fusion head as block-diagonal weights: 4 MXU matmuls total
    h1 = jnp.maximum(jnp.dot(x_all, w1_ref[...], preferred_element_type=F32)
                     + b1_ref[...], 0.0)
    h2 = jnp.maximum(jnp.dot(h1, w2_ref[...], preferred_element_type=F32)
                     + b2_ref[...], 0.0)
    y7 = (jnp.dot(x_all, wfx_ref[...], preferred_element_type=F32)
          + jnp.dot(h1, wfh1_ref[...], preferred_element_type=F32)
          + jnp.dot(h2, wfh2_ref[...], preferred_element_type=F32)
          + b7_ref[...])                                               # (tn, 7)
    is_quality = lax.broadcasted_iota(jnp.int32, y7.shape, 1) < 6
    q7 = jnp.where(is_quality, jax.nn.sigmoid(y7), y7)                 # fusion stays pre-sigmoid

    # per-node element sums + row means via one static (99, 10) matmul (no XLU column sums)
    xm = jnp.dot(x_all, mx_ref[...], preferred_element_type=F32)       # (tn, 10)

    # every per-node reduction folds into one (S x 52) matmul against the one-hot
    r_slab = jnp.concatenate(
        [jnp.ones((tn, 1), F32), xm, he, he * he, q7], axis=1)         # (tn, 52)
    dn = (((0,), (0,)), ((), ()))                                      # contract the node axis
    acc_stats[...] += lax.dot_general(oh, r_slab, dn, preferred_element_type=F32)

    xm_v = xm * valid
    acc_gram[...] += lax.dot_general(xm_v, xm_v, dn, preferred_element_type=F32)

    @pl.when(step == pl.num_programs(0) - 1)
    def _finalize():
        out_ref[0:n_shards, :] = jnp.concatenate(
            [acc_stats[...], jnp.zeros((n_shards, OUT_LANES - R_WIDTH), F32)], axis=1)
        out_ref[n_shards:n_shards + GRAM_ROWS, :] = jnp.concatenate(
            [acc_gram[...], jnp.zeros((GRAM_ROWS, OUT_LANES - GRAM_ROWS), F32)], axis=1)
        if out_rows > n_shards + GRAM_ROWS:
            out_ref[n_shards + GRAM_ROWS:out_rows, :] = jnp.zeros(
                (out_rows - n_shards - GRAM_ROWS, OUT_LANES), F32)


def fused_node_stats(sa_p, feats_p, packed, *, n_total, n_shards, tn, out_rows):
    grid = (sa_p.shape[0] // tn,)
    data = [sa_p] + list(feats_p)
    data_specs = [pl.BlockSpec((tn, a.shape[1]), lambda i: (i, 0)) for a in data]
    w_names = ('w1', 'b1', 'w2', 'b2', 'wfx', 'wfh1', 'wfh2', 'b7', 'mx')
    weights = [packed[k] for k in w_names]
    w_specs = [pl.BlockSpec(w.shape, lambda i: (0, 0)) for w in weights]
    kernel = functools.partial(_fused_node_kernel, n_total=n_total,
                               n_shards=n_shards, out_rows=out_rows)
    return pl.pallas_call(
        kernel,
        out_shape=jax.ShapeDtypeStruct((out_rows, OUT_LANES), F32),
        grid=grid,
        in_specs=data_specs + w_specs,
        out_specs=pl.BlockSpec((out_rows, OUT_LANES), lambda i: (0, 0)),
        scratch_shapes=[pltpu.VMEM((n_shards, R_WIDTH), F32),
                        pltpu.VMEM((GRAM_ROWS, GRAM_ROWS), F32)],
        compiler_params=pltpu.CompilerParams(
            dimension_semantics=("arbitrary",),
            vmem_limit_bytes=32 * 1024 * 1024),
    )(*data, *weights)


# ---------------------------------------------------------------------------
# Kernel 2: cross-shard edge reduction (gridded over edge blocks, packed (1,128) output).
# ---------------------------------------------------------------------------
def _edge_kernel(su_ref, sv_ref, valid_ref, dca_ref, dhe_ref, dtp_ref, out_ref, acc):
    step = pl.program_id(0)

    @pl.when(step == 0)
    def _init():
        acc[...] = jnp.zeros_like(acc)

    valid = valid_ref[...]
    cross = valid * (su_ref[...] != sv_ref[...]).astype(F32)   # int32 shard-id compare
    nca = jnp.sqrt(jnp.sum(dca_ref[...] ** 2, axis=1, keepdims=True))
    nhe = jnp.sqrt(jnp.sum(dhe_ref[...] ** 2, axis=1, keepdims=True))
    ntp = jnp.sqrt(jnp.sum(dtp_ref[...] ** 2, axis=1, keepdims=True))
    zero = jnp.zeros_like(valid)
    vals = jnp.concatenate(
        [valid, cross, cross * nca, cross * nhe, cross * ntp, zero, zero, zero], axis=1)
    acc[...] += jnp.sum(vals, axis=0, keepdims=True)

    @pl.when(step == pl.num_programs(0) - 1)
    def _finalize():
        out_ref[...] = jnp.concatenate(
            [acc[...], jnp.zeros((1, OUT_LANES - 8), F32)], axis=1)


def edge_stats(su, sv, valid, dca, dhe, dtp, *, te):
    grid = (su.shape[0] // te,)
    data = (su, sv, valid, dca, dhe, dtp)
    specs = [pl.BlockSpec((te, a.shape[1]), lambda i: (i, 0)) for a in data]
    return pl.pallas_call(
        _edge_kernel,
        out_shape=jax.ShapeDtypeStruct((1, OUT_LANES), F32),
        grid=grid,
        in_specs=specs,
        out_specs=pl.BlockSpec((1, OUT_LANES), lambda i: (0, 0)),
        scratch_shapes=[pltpu.VMEM((1, 8), F32)],
        compiler_params=pltpu.CompilerParams(
            dimension_semantics=("arbitrary",),
            vmem_limit_bytes=32 * 1024 * 1024),
    )(*data)


# ---------------------------------------------------------------------------
# Parameter construction (deterministic, nn.Linear-style uniform init) + block-diag packing.
# ---------------------------------------------------------------------------
def _linear_params(key, fan_in, fan_out):
    k1, k2 = jax.random.split(key)
    bound = 1.0 / float(fan_in) ** 0.5
    w = jax.random.uniform(k1, (fan_in, fan_out), F32, -bound, bound)
    b = jax.random.uniform(k2, (1, fan_out), F32, -bound, bound)
    return w, b


def init_params(key):
    keys = jax.random.split(key, len(FEATURE_ORDER) + 1)
    evaluators = {}
    for k, name, din, h1 in zip(keys[:-1], FEATURE_ORDER, FEATURE_DIMS, HIDDEN_DIMS):
        k1, k2, k3 = jax.random.split(k, 3)
        w1, b1 = _linear_params(k1, din, h1)
        if name == 'hardware':                 # the only 3-layer evaluator
            w2, b2 = _linear_params(k2, h1, H2_HW)
            w3, b3 = _linear_params(k3, H2_HW, 1)
        else:                                  # 2-layer evaluators: no identity middle layer
            w2, b2 = None, None
            w3, b3 = _linear_params(k3, h1, 1)
        evaluators[name] = dict(w1=w1, b1=b1, w2=w2, b2=b2, w3=w3, b3=b3)
    wf, bf = _linear_params(keys[-1], X_TOT, 1)
    return {'evaluators': evaluators, 'fusion': (wf, bf)}


def pack_params(params):
    """Block-diagonal packing so the whole evaluator/fusion stack is 4 MXU matmuls."""
    x_off = [0]
    for d in FEATURE_DIMS:
        x_off.append(x_off[-1] + d)
    h_off = [0]
    for h in HIDDEN_DIMS:
        h_off.append(h_off[-1] + h)

    w1 = jnp.zeros((X_TOT, H1_TOT), F32)
    b1 = jnp.zeros((1, H1_TOT), F32)
    wfh1 = jnp.zeros((H1_TOT, N_HEADS), F32)
    b7 = jnp.zeros((1, N_HEADS), F32)
    for i, name in enumerate(FEATURE_ORDER):
        e = params['evaluators'][name]
        w1 = w1.at[x_off[i]:x_off[i + 1], h_off[i]:h_off[i + 1]].set(e['w1'])
        b1 = b1.at[0, h_off[i]:h_off[i + 1]].set(e['b1'][0])
        b7 = b7.at[0, i].set(e['b3'][0, 0])
        if e['w2'] is None:                    # 2-layer evaluator: head reads h1 directly
            wfh1 = wfh1.at[h_off[i]:h_off[i + 1], i].set(e['w3'][:, 0])

    hwp = params['evaluators']['hardware']     # 3-layer evaluator tail (hardware only)
    w2 = jnp.zeros((H1_TOT, H2_HW), F32).at[h_off[0]:h_off[1], :].set(hwp['w2'])
    b2 = hwp['b2']
    wfh2 = jnp.zeros((H2_HW, N_HEADS), F32).at[:, 0].set(hwp['w3'][:, 0])

    wf, bf = params['fusion']                  # fusion head reads x_all directly
    wfx = jnp.zeros((X_TOT, N_HEADS), F32).at[:, 6].set(wf[:, 0])
    b7 = b7.at[0, 6].set(bf[0, 0])

    # static reduction matrix: cols 0..3 element sums of (hw, topo, dyn, onchain),
    # cols 4..9 per-node row-means of (hw, oc, tp, dy, he, ca)
    mx = jnp.zeros((X_TOT, 10), F32)
    for c, fi in enumerate((0, 2, 3, 1)):
        mx = mx.at[x_off[fi]:x_off[fi + 1], c].set(1.0)
    for fi in range(6):
        mx = mx.at[x_off[fi]:x_off[fi + 1], 4 + fi].set(1.0 / FEATURE_DIMS[fi])

    return dict(w1=w1, b1=b1, w2=w2, b2=b2, wfx=wfx, wfh1=wfh1,
                wfh2=wfh2, b7=b7, mx=mx)


# ---------------------------------------------------------------------------
# Forward pass (mirrors PerformanceEvaluator.forward for a single call).
# ---------------------------------------------------------------------------
def performance_evaluator_forward(features, shard_assignments, edge_index, packed,
                                  *, block_rows=256, edge_block_rows=512):
    hw = features['hardware']
    oc = features['onchain_behavior']
    tp = features['network_topology']
    dy = features['dynamic_attributes']
    he = features['heterogeneous_type']
    ca = features['categorical']
    n = hw.shape[0]
    s = shard_assignments.shape[1]

    # ----- node path: one fused Pallas kernel, grid over node blocks -----
    # TODO(synk): on v7x (64 MiB VMEM) halve block_rows relative to v6e/v5e when scaling n.
    tn = min(max(8, (block_rows // 8) * 8), _round_up(n, 8))
    n_pad = _round_up(n, tn)

    def pad_rows(x, rows):
        if x.shape[0] == rows:
            return x
        return jnp.pad(x, ((0, rows - x.shape[0]), (0, 0)))

    feats_p = [pad_rows(x, n_pad) for x in (hw, oc, tp, dy, he, ca)]
    sa_p = pad_rows(shard_assignments, n_pad)
    out_rows = _round_up(s + GRAM_ROWS, 8)
    stats = fused_node_stats(sa_p, feats_p, packed, n_total=n, n_shards=s,
                             tn=tn, out_rows=out_rows)

    cnt = stats[0:s, 0]
    sums = stats[0:s, 1:5]                       # element sums: hw, topo, dyn, onchain
    rm_shard = stats[0:s, 5:11]                  # per-shard sums of per-node row-means
    hsum = stats[0:s, 11:11 + HE_DIM]
    hsq = stats[0:s, 11 + HE_DIM:11 + 2 * HE_DIM]
    q_shard = stats[0:s, 11 + 2 * HE_DIM:11 + 2 * HE_DIM + N_HEADS]
    gram = stats[s:s + GRAM_ROWS, 0:GRAM_ROWS]

    safe_cnt = jnp.maximum(cnt, 1.0)
    nonempty = cnt > 0.0
    hw_mean = sums[:, 0] / (safe_cnt * HW_DIM)
    tp_mean = sums[:, 1] / (safe_cnt * TP_DIM)
    dy_mean = sums[:, 2] / (safe_cnt * DY_DIM)
    oc_mean = sums[:, 3] / (safe_cnt * OC_DIM)

    # ----- balance_score -----
    eff_load = cnt * (1.0 - hw_mean * 0.3) * (1.0 - tp_mean * 0.2) * (1.0 + dy_mean * 0.5)
    eff_load = jnp.where(nonempty, eff_load, 0.0)
    valid_l = eff_load > 0.0
    n_valid = jnp.sum(valid_l.astype(F32))
    mean_load = jnp.sum(jnp.where(valid_l, eff_load, 0.0)) / jnp.maximum(n_valid, 1.0)
    var_load = jnp.sum(jnp.where(valid_l, (eff_load - mean_load) ** 2, 0.0)) \
        / jnp.maximum(n_valid - 1.0, 1.0)
    balance = jnp.clip(1.0 - jnp.sqrt(var_load) / (mean_load + 1e-8), 0.0, 1.0)
    balance_score = jnp.where(n_valid <= 1.0, jnp.asarray(0.5, F32), balance)

    # ----- security_score -----
    # TODO(synk): (sumsq - n*mean^2) has catastrophic cancellation for huge shards;
    #             acceptable here, guarded against negatives below.
    h_mean = hsum / safe_cnt[:, None]
    h_var = (hsq - safe_cnt[:, None] * h_mean ** 2) / jnp.maximum(cnt[:, None] - 1.0, 1.0)
    het_div = jnp.mean(jnp.sqrt(jnp.maximum(h_var, 0.0)), axis=1)
    size_factor = jnp.minimum(cnt / 10.0, 1.0) * (1.0 - jnp.maximum(cnt - 50.0, 0.0) / 100.0)
    sec = oc_mean * 0.6 + het_div * 0.2 + size_factor * 0.2
    sec = jnp.where(nonempty, sec, 1.0)
    security_score = jnp.maximum(jnp.minimum(1.0, jnp.min(sec)), 0.0)

    # ----- consensus_latency -----
    oc_mean_all = jnp.sum(sums[:, 3]) / (n * OC_DIM)
    dy_mean_all = jnp.sum(sums[:, 2]) / (n * DY_DIM)
    consensus_latency = jnp.clip(1.0 - oc_mean_all + dy_mean_all * 0.3, 0.0, 1.0)

    # ----- per-feature quality + fusion quality (from fused heads) -----
    q_tot = jnp.sum(q_shard, axis=0)
    quality = {f'{name}_quality': q_tot[i] / n for i, name in enumerate(FEATURE_ORDER)}
    fusion = jax.nn.sigmoid(q_tot[6] / n)

    # ----- feature_synergy from the row-mean Gram accumulator -----
    # cov is an unnormalized covariance (Gram - outer/N); normalization cancels in corr.
    srm = jnp.sum(rm_shard, axis=0)
    srm2 = gram[4:10, 4:10]
    cov = srm2 - jnp.outer(srm, srm) / n
    d = jnp.sqrt(jnp.maximum(jnp.diag(cov), 0.0))
    corr = cov / (d[:, None] * d[None, :] + 1e-12)     # epsilon guards constant features
    upper = jnp.triu(jnp.ones((6, 6), F32), k=1)
    feature_synergy = jnp.sum(jnp.abs(corr) * upper) / 15.0

    # ----- cross_tx_rate (edge path) -----
    hard = jnp.argmax(shard_assignments, axis=1).astype(jnp.int32)
    u = edge_index[0].astype(jnp.int32)
    v = edge_index[1].astype(jnp.int32)
    e = u.shape[0]
    te = min(max(8, (edge_block_rows // 8) * 8), _round_up(e, 8))
    e_pad = _round_up(e, te)
    if e_pad != e:                               # pad with out-of-range endpoints -> invalid
        fill = jnp.full((e_pad - e,), n, jnp.int32)
        u = jnp.concatenate([u, fill])
        v = jnp.concatenate([v, fill])
    valid_e = ((u < n) & (v < n)).astype(F32)[:, None]
    uc = jnp.clip(u, 0, n - 1)
    vc = jnp.clip(v, 0, n - 1)
    su = hard[uc][:, None]
    sv = hard[vc][:, None]
    # TODO(synk): the per-edge row gathers stay in XLA glue; moving them in-kernel would need
    #             a manual make_async_copy DMA gather per edge block rather than BlockSpecs.
    dca = ca[uc] - ca[vc]
    dhe = he[uc] - he[vc]
    dtp = tp[uc] - tp[vc]
    eo = edge_stats(su, sv, valid_e, dca, dhe, dtp, te=te)
    n_valid_e, n_cross = eo[0, 0], eo[0, 1]
    s_cat, s_het, s_tp = eo[0, 2], eo[0, 3], eo[0, 4]
    base_rate = n_cross / jnp.maximum(n_valid_e, 1.0)
    safe_cross = jnp.maximum(n_cross, 1.0)
    penalty = (s_cat / safe_cross) * 0.4 + (s_het / safe_cross) * 0.3 + (s_tp / safe_cross) * 0.3
    cross_tx_rate = jnp.clip(
        jnp.where(n_cross > 0.0, base_rate * (1.0 + penalty * 0.2), base_rate), 0.0, 1.0)

    metrics = {
        'balance_score': balance_score,
        'cross_tx_rate': cross_tx_rate,
        'security_score': security_score,
        'consensus_latency': consensus_latency,
        'fusion_quality': fusion,
        'feature_synergy': feature_synergy,
    }
    metrics.update(quality)
    return metrics


if __name__ == "__main__":
    key = jax.random.PRNGKey(0)
    k_param, k_hw, k_oc, k_tp, k_dy, k_he, k_ca, k_sa, k_e = jax.random.split(key, 9)

    N, S, E = 20, 4, 37
    features = {
        'hardware': jax.random.uniform(k_hw, (N, HW_DIM), F32) * 0.6 + 0.3,
        'onchain_behavior': jax.random.uniform(k_oc, (N, OC_DIM), F32) * 0.5 + 0.4,
        'network_topology': jax.random.uniform(k_tp, (N, TP_DIM), F32) * 0.4 + 0.3,
        'dynamic_attributes': jax.random.uniform(k_dy, (N, DY_DIM), F32) * 0.8 + 0.1,
        'heterogeneous_type': jax.random.uniform(k_he, (N, HE_DIM), F32) * 0.3 + 0.2,
        'categorical': jax.random.uniform(k_ca, (N, CA_DIM), F32) * 0.5 + 0.25,
    }
    # deterministic assignment: ~N/S nodes per shard (keeps every shard non-trivial)
    shard_assignments = jax.nn.one_hot(jnp.arange(N) % S, S, dtype=F32) \
        + 0.05 * jax.random.uniform(k_sa, (N, S), F32)
    edge_index = jax.random.randint(k_e, (2, E), 0, N, dtype=jnp.int32)

    params = init_params(k_param)
    packed = pack_params(params)

    # small block sizes so the demo exercises multi-block grids, accumulators and row padding
    fwd = jax.jit(functools.partial(performance_evaluator_forward,
                                    block_rows=8, edge_block_rows=16))
    metrics = fwd(features, shard_assignments, edge_index, packed)
    jax.block_until_ready(metrics)

    print("KERNEL_OK")
</pallas_src>

<mosaic_0001>
module attributes {stable_mosaic.version = 11 : i64} {
  func.func @_edge_kernel(%arg0: i32, %arg1: memref<16x1xi32, #tpu.memory_space<vmem>>, %arg2: memref<16x1xi32, #tpu.memory_space<vmem>>, %arg3: memref<16x1xf32, #tpu.memory_space<vmem>>, %arg4: memref<16x15xf32, #tpu.memory_space<vmem>>, %arg5: memref<16x17xf32, #tpu.memory_space<vmem>>, %arg6: memref<16x20xf32, #tpu.memory_space<vmem>>, %arg7: memref<1x128xf32, #tpu.memory_space<vmem>>, %arg8: memref<1x8xf32, #tpu.memory_space<vmem>>) attributes {dimension_semantics = [#tpu.dimension_semantics<arbitrary>], iteration_bounds = array<i64: 3>, scalar_prefetch = 0 : i64, scratch_operands = 1 : i64, tpu.core_type = #tpu.core_type<tc>, window_params = [{transform_indices = @transform_0, window_bounds = array<i64: 16, 1>}, {transform_indices = @transform_1, window_bounds = array<i64: 16, 1>}, {transform_indices = @transform_2, window_bounds = array<i64: 16, 1>}, {transform_indices = @transform_3, window_bounds = array<i64: 16, 15>}, {transform_indices = @transform_4, window_bounds = array<i64: 16, 17>}, {transform_indices = @transform_5, window_bounds = array<i64: 16, 20>}, {pipeline_mode = #tpu.pipeline_mode<synchronous>, transform_indices = @transform_6, window_bounds = array<i64: 1, 128>}]} {
    %c0_i32 = arith.constant 0 : i32
    %0 = arith.cmpi eq, %arg0, %c0_i32 : i32
    %1 = arith.extui %0 : i1 to i32
    %c0_i32_0 = arith.constant 0 : i32
    %2 = arith.cmpi ne, %1, %c0_i32_0 : i32
    scf.if %2 {
      %cst_21 = arith.constant 0.000000e+00 : f32
      %38 = vector.broadcast %cst_21 : f32 to vector<1x8xf32>
      %c0_22 = arith.constant 0 : index
      %c0_23 = arith.constant 0 : index
      %39 = vector.load %arg8[%c0_22, %c0_23] : memref<1x8xf32, #tpu.memory_space<vmem>>, vector<1x8xf32>
      tpu.vector_store %arg8[%c0_22, %c0_23], %38 {strides = array<i32>} : memref<1x8xf32, #tpu.memory_space<vmem>>, vector<1x8xf32>,
    } else {
    }
    %c0 = arith.constant 0 : index
    %c0_1 = arith.constant 0 : index
    %3 = vector.load %arg3[%c0, %c0_1] : memref<16x1xf32, #tpu.memory_space<vmem>>, vector<16x1xf32>
    %c0_2 = arith.constant 0 : index
    %c0_3 = arith.constant 0 : index
    %4 = vector.load %arg1[%c0_2, %c0_3] : memref<16x1xi32, #tpu.memory_space<vmem>>, vector<16x1xi32>
    %c0_4 = arith.constant 0 : index
    %c0_5 = arith.constant 0 : index
    %5 = vector.load %arg2[%c0_4, %c0_5] : memref<16x1xi32, #tpu.memory_space<vmem>>, vector<16x1xi32>
    %6 = arith.cmpi ne, %4, %5 : vector<16x1xi32>
    %7 = arith.extui %6 : vector<16x1xi1> to vector<16x1xi32>
    %8 = arith.sitofp %7 : vector<16x1xi32> to vector<16x1xf32>
    %9 = arith.mulf %3, %8 : vector<16x1xf32>
    %c0_6 = arith.constant 0 : index
    %c0_7 = arith.constant 0 : index
    %10 = vector.load %arg4[%c0_6, %c0_7] : memref<16x15xf32, #tpu.memory_space<vmem>>, vector<16x15xf32>
    %11 = arith.mulf %10, %10 : vector<16x15xf32>
    %cst = arith.constant dense<0.000000e+00> : vector<16xf32>
    %12 = vector.multi_reduction <add>, %11, %cst [1] : vector<16x15xf32> to vector<16xf32>
    %13 = vector.shape_cast %12 : vector<16xf32> to vector<16x1xf32>
    %14 = math.sqrt %13 : vector<16x1xf32>
    %c0_8 = arith.constant 0 : index
    %c0_9 = arith.constant 0 : index
    %15 = vector.load %arg5[%c0_8, %c0_9] : memref<16x17xf32, #tpu.memory_space<vmem>>, vector<16x17xf32>
    %16 = arith.mulf %15, %15 : vector<16x17xf32>
    %cst_10 = arith.constant dense<0.000000e+00> : vector<16xf32>
    %17 = vector.multi_reduction <add>, %16, %cst_10 [1] : vector<16x17xf32> to vector<16xf32>
    %18 = vector.shape_cast %17 : vector<16xf32> to vector<16x1xf32>
    %19 = math.sqrt %18 : vector<16x1xf32>
    %c0_11 = arith.constant 0 : index
    %c0_12 = arith.constant 0 : index
    %20 = vector.load %arg6[%c0_11, %c0_12] : memref<16x20xf32, #tpu.memory_space<vmem>>, vector<16x20xf32>
    %21 = arith.mulf %20, %20 : vector<16x20xf32>
    %cst_13 = arith.constant dense<0.000000e+00> : vector<16xf32>
    %22 = vector.multi_reduction <add>, %21, %cst_13 [1] : vector<16x20xf32> to vector<16xf32>
    %23 = vector.shape_cast %22 : vector<16xf32> to vector<16x1xf32>
    %24 = math.sqrt %23 : vector<16x1xf32>
    %cst_14 = arith.constant 0.000000e+00 : f32
    %25 = vector.broadcast %cst_14 : f32 to vector<16x1xf32>
    %26 = arith.mulf %9, %14 : vector<16x1xf32>
    %27 = arith.mulf %9, %19 : vector<16x1xf32>
    %28 = arith.mulf %9, %24 : vector<16x1xf32>
    %29 = tpu.concatenate %3, %9, %26, %27, %28, %25, %25, %25 in 1 : vector<16x1xf32>, vector<16x1xf32>, vector<16x1xf32>, vector<16x1xf32>, vector<16x1xf32>, vector<16x1xf32>, vector<16x1xf32>, vector<16x1xf32> -> vector<16x8xf32>
    %c0_15 = arith.constant 0 : index
    %c0_16 = arith.constant 0 : index
    %30 = vector.load %arg8[%c0_15, %c0_16] : memref<1x8xf32, #tpu.memory_space<vmem>>, vector<1x8xf32>
    %cst_17 = arith.constant dense<0.000000e+00> : vector<8xf32>
    %31 = vector.multi_reduction <add>, %29, %cst_17 [0] : vector<16x8xf32> to vector<8xf32>
    %32 = vector.shape_cast %31 : vector<8xf32> to vector<1x8xf32>
    %33 = arith.addf %30, %32 : vector<1x8xf32>
    %c0_18 = arith.constant 0 : index
    %c0_19 = arith.constant 0 : index
    %34 = vector.load %arg8[%c0_18, %c0_19] : memref<1x8xf32, #tpu.memory_space<vmem>>, vector<1x8xf32>
    tpu.vector_store %arg8[%c0_18, %c0_19], %33 {strides = array<i32>} : memref<1x8xf32, #tpu.memory_space<vmem>>, vector<1x8xf32>,
    %c2_i32 = arith.constant 2 : i32
    %35 = arith.cmpi eq, %arg0, %c2_i32 : i32
    %36 = arith.extui %35 : i1 to i32
    %c0_i32_20 = arith.constant 0 : i32
    %37 = arith.cmpi ne, %36, %c0_i32_20 : i32
    scf.if %37 {
      %c0_21 = arith.constant 0 : index
      %c0_22 = arith.constant 0 : index
      %38 = vector.load %arg8[%c0_21, %c0_22] : memref<1x8xf32, #tpu.memory_space<vmem>>, vector<1x8xf32>
      %cst_23 = arith.constant 0.000000e+00 : f32
      %39 = vector.broadcast %cst_23 : f32 to vector<1x120xf32>
      %40 = tpu.concatenate %38, %39 in 1 : vector<1x8xf32>, vector<1x120xf32> -> vector<1x128xf32>
      %c0_24 = arith.constant 0 : index
      %c0_25 = arith.constant 0 : index
      %41 = vector.load %arg7[%c0_24, %c0_25] : memref<1x128xf32, #tpu.memory_space<vmem>>, vector<1x128xf32>
      tpu.vector_store %arg7[%c0_24, %c0_25], %40 {strides = array<i32>} : memref<1x128xf32, #tpu.memory_space<vmem>>, vector<1x128xf32>,
    } else {
    }
    return
  }
  func.func @transform_0(%arg0: i32) -> (i32, i32) {
    %c0_i32 = arith.constant 0 : i32
    %c0_i32_0 = arith.constant 0 : i32
    return %arg0, %c0_i32 : i32, i32
  }
  func.func @transform_1(%arg0: i32) -> (i32, i32) {
    %c0_i32 = arith.constant 0 : i32
    %c0_i32_0 = arith.constant 0 : i32
    return %arg0, %c0_i32 : i32, i32
  }
  func.func @transform_2(%arg0: i32) -> (i32, i32) {
    %c0_i32 = arith.constant 0 : i32
    %c0_i32_0 = arith.constant 0 : i32
    return %arg0, %c0_i32 : i32, i32
  }
  func.func @transform_3(%arg0: i32) -> (i32, i32) {
    %c0_i32 = arith.constant 0 : i32
    %c0_i32_0 = arith.constant 0 : i32
    return %arg0, %c0_i32 : i32, i32
  }
  func.func @transform_4(%arg0: i32) -> (i32, i32) {
    %c0_i32 = arith.constant 0 : i32
    %c0_i32_0 = arith.constant 0 : i32
    return %arg0, %c0_i32 : i32, i32
  }
  func.func @transform_5(%arg0: i32) -> (i32, i32) {
    %c0_i32 = arith.constant 0 : i32
    %c0_i32_0 = arith.constant 0 : i32
    return %arg0, %c0_i32 : i32, i32
  }
  func.func @transform_6(%arg0: i32) -> (i32, i32) {
    %c0_i32 = arith.constant 0 : i32
    %c0_i32_0 = arith.constant 0 : i32
    %c0_i32_1 = arith.constant 0 : i32
    return %c0_i32, %c0_i32_0 : i32, i32
  }
}

module attributes {stable_mosaic.version = 11 : i64} {
  func.func @_fused_node_kernel(%arg0: i32, %arg1: memref<8x4xf32, #tpu.memory_space<vmem>>, %arg2: memref<8x17xf32, #tpu.memory_space<vmem>>, %arg3: memref<8x17xf32, #tpu.memory_space<vmem>>, %arg4: memref<8x20xf32, #tpu.memory_space<vmem>>, %arg5: memref<8x13xf32, #tpu.memory_space<vmem>>, %arg6: memref<8x17xf32, #tpu.memory_space<vmem>>, %arg7: memref<8x15xf32, #tpu.memory_space<vmem>>, %arg8: memref<99x168xf32, #tpu.memory_space<vmem>>, %arg9: memref<1x168xf32, #tpu.memory_space<vmem>>, %arg10: memref<168x16xf32, #tpu.memory_space<vmem>>, %arg11: memref<1x16xf32, #tpu.memory_space<vmem>>, %arg12: memref<99x7xf32, #tpu.memory_space<vmem>>, %arg13: memref<168x7xf32, #tpu.memory_space<vmem>>, %arg14: memref<16x7xf32, #tpu.memory_space<vmem>>, %arg15: memref<1x7xf32, #tpu.memory_space<vmem>>, %arg16: memref<99x10xf32, #tpu.memory_space<vmem>>, %arg17: memref<16x128xf32, #tpu.memory_space<vmem>>, %arg18: memref<4x52xf32, #tpu.memory_space<vmem>>, %arg19: memref<10x10xf32, #tpu.memory_space<vmem>>) attributes {dimension_semantics = [#tpu.dimension_semantics<arbitrary>], iteration_bounds = array<i64: 3>, scalar_prefetch = 0 : i64, scratch_operands = 2 : i64, tpu.core_type = #tpu.core_type<tc>, window_params = [{transform_indices = @transform_0, window_bounds = array<i64: 8, 4>}, {transform_indices = @transform_1, window_bounds = array<i64: 8, 17>}, {transform_indices = @transform_2, window_bounds = array<i64: 8, 17>}, {transform_indices = @transform_3, window_bounds = array<i64: 8, 20>}, {transform_indices = @transform_4, window_bounds = array<i64: 8, 13>}, {transform_indices = @transform_5, window_bounds = array<i64: 8, 17>}, {transform_indices = @transform_6, window_bounds = array<i64: 8, 15>}, {pipeline_mode = #tpu.pipeline_mode<synchronous>, transform_indices = @transform_7, window_bounds = array<i64: 99, 168>}, {pipeline_mode = #tpu.pipeline_mode<synchronous>, transform_indices = @transform_8, window_bounds = array<i64: 1, 168>}, {pipeline_mode = #tpu.pipeline_mode<synchronous>, transform_indices = @transform_9, window_bounds = array<i64: 168, 16>}, {pipeline_mode = #tpu.pipeline_mode<synchronous>, transform_indices = @transform_10, window_bounds = array<i64: 1, 16>}, {pipeline_mode = #tpu.pipeline_mode<synchronous>, transform_indices = @transform_11, window_bounds = array<i64: 99, 7>}, {pipeline_mode = #tpu.pipeline_mode<synchronous>, transform_indices = @transform_12, window_bounds = array<i64: 168, 7>}, {pipeline_mode = #tpu.pipeline_mode<synchronous>, transform_indices = @transform_13, window_bounds = array<i64: 16, 7>}, {pipeline_mode = #tpu.pipeline_mode<synchronous>, transform_indices = @transform_14, window_bounds = array<i64: 1, 7>}, {pipeline_mode = #tpu.pipeline_mode<synchronous>, transform_indices = @transform_15, window_bounds = array<i64: 99, 10>}, {pipeline_mode = #tpu.pipeline_mode<synchronous>, transform_indices = @transform_16, window_bounds = array<i64: 16, 128>}]} {
    %c0_i32 = arith.constant 0 : i32
    %0 = arith.cmpi eq, %arg0, %c0_i32 : i32
    %1 = arith.extui %0 : i1 to i32
    %c0_i32_0 = arith.constant 0 : i32
    %2 = arith.cmpi ne, %1, %c0_i32_0 : i32
    scf.if %2 {
      %cst_55 = arith.constant 0.000000e+00 : f32
      %87 = vector.broadcast %cst_55 : f32 to vector<4x52xf32>
      %c0_56 = arith.constant 0 : index
      %c0_57 = arith.constant 0 : index
      %88 = vector.load %arg18[%c0_56, %c0_57] : memref<4x52xf32, #tpu.memory_space<vmem>>, vector<4x52xf32>
      tpu.vector_store %arg18[%c0_56, %c0_57], %87 {strides = array<i32>} : memref<4x52xf32, #tpu.memory_space<vmem>>, vector<4x52xf32>,
      %cst_58 = arith.constant 0.000000e+00 : f32
      %89 = vector.broadcast %cst_58 : f32 to vector<10x10xf32>
      %c0_59 = arith.constant 0 : index
      %c0_60 = arith.constant 0 : index
      %90 = vector.load %arg19[%c0_59, %c0_60] : memref<10x10xf32, #tpu.memory_space<vmem>>, vector<10x10xf32>
      tpu.vector_store %arg19[%c0_59, %c0_60], %89 {strides = array<i32>} : memref<10x10xf32, #tpu.memory_space<vmem>>, vector<10x10xf32>,
    } else {
    }
    %c0 = arith.constant 0 : index
    %c0_1 = arith.constant 0 : index
    %3 = vector.load %arg2[%c0, %c0_1] : memref<8x17xf32, #tpu.memory_space<vmem>>, vector<8x17xf32>
    %c0_2 = arith.constant 0 : index
    %c0_3 = arith.constant 0 : index
    %4 = vector.load %arg3[%c0_2, %c0_3] : memref<8x17xf32, #tpu.memory_space<vmem>>, vector<8x17xf32>
    %c0_4 = arith.constant 0 : index
    %c0_5 = arith.constant 0 : index
    %5 = vector.load %arg4[%c0_4, %c0_5] : memref<8x20xf32, #tpu.memory_space<vmem>>, vector<8x20xf32>
    %c0_6 = arith.constant 0 : index
    %c0_7 = arith.constant 0 : index
    %6 = vector.load %arg5[%c0_6, %c0_7] : memref<8x13xf32, #tpu.memory_space<vmem>>, vector<8x13xf32>
    %c0_8 = arith.constant 0 : index
    %c0_9 = arith.constant 0 : index
    %7 = vector.load %arg6[%c0_8, %c0_9] : memref<8x17xf32, #tpu.memory_space<vmem>>, vector<8x17xf32>
    %c0_10 = arith.constant 0 : index
    %c0_11 = arith.constant 0 : index
    %8 = vector.load %arg7[%c0_10, %c0_11] : memref<8x15xf32, #tpu.memory_space<vmem>>, vector<8x15xf32>
    %c0_12 = arith.constant 0 : index
    %c0_13 = arith.constant 0 : index
    %9 = vector.load %arg1[%c0_12, %c0_13] : memref<8x4xf32, #tpu.memory_space<vmem>>, vector<8x4xf32>
    %10 = tpu.concatenate %3, %4, %5, %6, %7, %8 in 1 : vector<8x17xf32>, vector<8x17xf32>, vector<8x20xf32>, vector<8x13xf32>, vector<8x17xf32>, vector<8x15xf32> -> vector<8x99xf32>
    %c8_i32 = arith.constant 8 : i32
    %11 = arith.muli %arg0, %c8_i32 : i32
    %12 = tpu.iota {dimensions = array<i32: 0>} : vector<8x1xi32>
    %13 = vector.broadcast %11 : i32 to vector<8x1xi32>
    %14 = arith.addi %13, %12 : vector<8x1xi32>
    %c20_i32 = arith.constant 20 : i32
    %15 = vector.broadcast %c20_i32 : i32 to vector<8x1xi32>
    %16 = arith.cmpi slt, %14, %15 : vector<8x1xi32>
    %17 = arith.extui %16 : vector<8x1xi1> to vector<8x1xi32>
    %18 = arith.sitofp %17 : vector<8x1xi32> to vector<8x1xf32>
    %19 = tpu.iota {dimensions = array<i32: 1>} : vector<8x4xi32>
    %20 = arith.sitofp %19 : vector<8x4xi32> to vector<8x4xf32>
    %cst = arith.constant dense<0xFF800000> : vector<8xf32>
    %21 = vector.multi_reduction <maximumf>, %9, %cst [1] : vector<8x4xf32> to vector<8xf32>
    %22 = vector.shape_cast %21 : vector<8xf32> to vector<8x1xf32>
    %23 = vector.broadcast %22 : vector<8x1xf32> to vector<8x4xf32>
    %24 = arith.cmpf oge, %9, %23 : vector<8x4xf32>
    %cst_14 = arith.constant 4.000000e+00 : f32
    %25 = vector.broadcast %cst_14 : f32 to vector<8x4xf32>
    %26 = arith.select %24, %20, %25 : vector<8x4xi1>, vector<8x4xf32>
    %cst_15 = arith.constant dense<0x7F800000> : vector<8xf32>
    %27 = vector.multi_reduction <minimumf>, %26, %cst_15 [1] : vector<8x4xf32> to vector<8xf32>
    %28 = vector.shape_cast %27 : vector<8xf32> to vector<8x1xf32>
    %29 = vector.broadcast %28 : vector<8x1xf32> to vector<8x4xf32>
    %30 = arith.cmpf oeq, %20, %29 : vector<8x4xf32>
    %31 = arith.extui %30 : vector<8x4xi1> to vector<8x4xi32>
    %32 = arith.sitofp %31 : vector<8x4xi32> to vector<8x4xf32>
    %33 = vector.broadcast %18 : vector<8x1xf32> to vector<8x4xf32>
    %34 = arith.mulf %32, %33 : vector<8x4xf32>
    %c0_16 = arith.constant 0 : index
    %c0_17 = arith.constant 0 : index
    %35 = vector.load %arg8[%c0_16, %c0_17] : memref<99x168xf32, #tpu.memory_space<vmem>>, vector<99x168xf32>
    %cst_18 = arith.constant dense<0.000000e+00> : vector<8x168xf32>
    %36 = tpu.matmul %10, %35, %cst_18 {dimension_numbers = #tpu.dot_dimension_numbers<[1], [0], [0], [1], [0, 0, 1, 1], [], []>} : vector<8x99xf32>, vector<99x168xf32>, vector<8x168xf32> -> vector<8x168xf32>
    %c0_19 = arith.constant 0 : index
    %c0_20 = arith.constant 0 : index
    %37 = vector.load %arg9[%c0_19, %c0_20] : memref<1x168xf32, #tpu.memory_space<vmem>>, vector<1x168xf32>
    %38 = vector.broadcast %37 : vector<1x168xf32> to vector<8x168xf32>
    %39 = arith.addf %36, %38 : vector<8x168xf32>
    %cst_21 = arith.constant 0.000000e+00 : f32
    %40 = vector.broadcast %cst_21 : f32 to vector<8x168xf32>
    %41 = arith.maximumf %39, %40 : vector<8x168xf32>
    %c0_22 = arith.constant 0 : index
    %c0_23 = arith.constant 0 : index
    %42 = vector.load %arg10[%c0_22, %c0_23] : memref<168x16xf32, #tpu.memory_space<vmem>>, vector<168x16xf32>
    %cst_24 = arith.constant dense<0.000000e+00> : vector<8x16xf32>
    %43 = tpu.matmul %41, %42, %cst_24 {dimension_numbers = #tpu.dot_dimension_numbers<[1], [0], [0], [1], [0, 0, 1, 1], [], []>} : vector<8x168xf32>, vector<168x16xf32>, vector<8x16xf32> -> vector<8x16xf32>
    %c0_25 = arith.constant 0 : index
    %c0_26 = arith.constant 0 : index
    %44 = vector.load %arg11[%c0_25, %c0_26] : memref<1x16xf32, #tpu.memory_space<vmem>>, vector<1x16xf32>
    %45 = vector.broadcast %44 : vector<1x16xf32> to vector<8x16xf32>
    %46 = arith.addf %43, %45 : vector<8x16xf32>
    %cst_27 = arith.constant 0.000000e+00 : f32
    %47 = vector.broadcast %cst_27 : f32 to vector<8x16xf32>
    %48 = arith.maximumf %46, %47 : vector<8x16xf32>
    %c0_28 = arith.constant 0 : index
    %c0_29 = arith.constant 0 : index
    %49 = vector.load %arg12[%c0_28, %c0_29] : memref<99x7xf32, #tpu.memory_space<vmem>>, vector<99x7xf32>
    %cst_30 = arith.constant dense<0.000000e+00> : vector<8x7xf32>
    %50 = tpu.matmul %10, %49, %cst_30 {dimension_numbers = #tpu.dot_dimension_numbers<[1], [0], [0], [1], [0, 0, 1, 1], [], []>} : vector<8x99xf32>, vector<99x7xf32>, vector<8x7xf32> -> vector<8x7xf32>
    %c0_31 = arith.constant 0 : index
    %c0_32 = arith.constant 0 : index
    %51 = vector.load %arg13[%c0_31, %c0_32] : memref<168x7xf32, #tpu.memory_space<vmem>>, vector<168x7xf32>
    %cst_33 = arith.constant dense<0.000000e+00> : vector<8x7xf32>
    %52 = tpu.matmul %41, %51, %cst_33 {dimension_numbers = #tpu.dot_dimension_numbers<[1], [0], [0], [1], [0, 0, 1, 1], [], []>} : vector<8x168xf32>, vector<168x7xf32>, vector<8x7xf32> -> vector<8x7xf32>
    %53 = arith.addf %50, %52 : vector<8x7xf32>
    %c0_34 = arith.constant 0 : index
    %c0_35 = arith.constant 0 : index
    %54 = vector.load %arg14[%c0_34, %c0_35] : memref<16x7xf32, #tpu.memory_space<vmem>>, vector<16x7xf32>
    %cst_36 = arith.constant dense<0.000000e+00> : vector<8x7xf32>
    %55 = tpu.matmul %48, %54, %cst_36 {dimension_numbers = #tpu.dot_dimension_numbers<[1], [0], [0], [1], [0, 0, 1, 1], [], []>} : vector<8x16xf32>, vector<16x7xf32>, vector<8x7xf32> -> vector<8x7xf32>
    %56 = arith.addf %53, %55 : vector<8x7xf32>
    %c0_37 = arith.constant 0 : index
    %c0_38 = arith.constant 0 : index
    %57 = vector.load %arg15[%c0_37, %c0_38] : memref<1x7xf32, #tpu.memory_space<vmem>>, vector<1x7xf32>
    %58 = vector.broadcast %57 : vector<1x7xf32> to vector<8x7xf32>
    %59 = arith.addf %56, %58 : vector<8x7xf32>
    %60 = tpu.iota {dimensions = array<i32: 1>} : vector<8x7xi32>
    %c6_i32 = arith.constant 6 : i32
    %61 = vector.broadcast %c6_i32 : i32 to vector<8x7xi32>
    %62 = arith.cmpi slt, %60, %61 : vector<8x7xi32>
    %63 = arith.negf %59 : vector<8x7xf32>
    %64 = math.exp %63 : vector<8x7xf32>
    %cst_39 = arith.constant 1.000000e+00 : f32
    %65 = vector.broadcast %cst_39 : f32 to vector<8x7xf32>
    %66 = arith.addf %65, %64 : vector<8x7xf32>
    %67 = arith.divf %65, %66 : vector<8x7xf32>
    %68 = arith.select %62, %67, %59 : vector<8x7xi1>, vector<8x7xf32>
    %c0_40 = arith.constant 0 : index
    %c0_41 = arith.constant 0 : index
    %69 = vector.load %arg16[%c0_40, %c0_41] : memref<99x10xf32, #tpu.memory_space<vmem>>, vector<99x10xf32>
    %cst_42 = arith.constant dense<0.000000e+00> : vector<8x10xf32>
    %70 = tpu.matmul %10, %69, %cst_42 {dimension_numbers = #tpu.dot_dimension_numbers<[1], [0], [0], [1], [0, 0, 1, 1], [], []>} : vector<8x99xf32>, vector<99x10xf32>, vector<8x10xf32> -> vector<8x10xf32>
    %cst_43 = arith.constant 1.000000e+00 : f32
    %71 = vector.broadcast %cst_43 : f32 to vector<8x1xf32>
    %72 = arith.mulf %7, %7 : vector<8x17xf32>
    %73 = tpu.concatenate %71, %70, %7, %72, %68 in 1 : vector<8x1xf32>, vector<8x10xf32>, vector<8x17xf32>, vector<8x17xf32>, vector<8x7xf32> -> vector<8x52xf32>
    %c0_44 = arith.constant 0 : index
    %c0_45 = arith.constant 0 : index
    %74 = vector.load %arg18[%c0_44, %c0_45] : memref<4x52xf32, #tpu.memory_space<vmem>>, vector<4x52xf32>
    %cst_46 = arith.constant dense<0.000000e+00> : vector<4x52xf32>
    %75 = tpu.matmul %34, %73, %cst_46 {dimension_numbers = #tpu.dot_dimension_numbers<[0], [0], [1], [1], [0, 1, 1, 1], [], []>} : vector<8x4xf32>, vector<8x52xf32>, vector<4x52xf32> -> vector<4x52xf32>
    %76 = arith.addf %74, %75 : vector<4x52xf32>
    %c0_47 = arith.constant 0 : index
    %c0_48 = arith.constant 0 : index
    %77 = vector.load %arg18[%c0_47, %c0_48] : memref<4x52xf32, #tpu.memory_space<vmem>>, vector<4x52xf32>
    tpu.vector_store %arg18[%c0_47, %c0_48], %76 {strides = array<i32>} : memref<4x52xf32, #tpu.memory_space<vmem>>, vector<4x52xf32>,
    %78 = vector.broadcast %18 : vector<8x1xf32> to vector<8x10xf32>
    %79 = arith.mulf %70, %78 : vector<8x10xf32>
    %c0_49 = arith.constant 0 : index
    %c0_50 = arith.constant 0 : index
    %80 = vector.load %arg19[%c0_49, %c0_50] : memref<10x10xf32, #tpu.memory_space<vmem>>, vector<10x10xf32>
    %cst_51 = arith.constant dense<0.000000e+00> : vector<10x10xf32>
    %81 = tpu.matmul %79, %79, %cst_51 {dimension_numbers = #tpu.dot_dimension_numbers<[0], [0], [1], [1], [0, 1, 1, 1], [], []>} : vector<8x10xf32>, vector<8x10xf32>, vector<10x10xf32> -> vector<10x10xf32>
    %82 = arith.addf %80, %81 : vector<10x10xf32>
    %c0_52 = arith.constant 0 : index
    %c0_53 = arith.constant 0 : index
    %83 = vector.load %arg19[%c0_52, %c0_53] : memref<10x10xf32, #tpu.memory_space<vmem>>, vector<10x10xf32>
    tpu.vector_store %arg19[%c0_52, %c0_53], %82 {strides = array<i32>} : memref<10x10xf32, #tpu.memory_space<vmem>>, vector<10x10xf32>,
    %c2_i32 = arith.constant 2 : i32
    %84 = arith.cmpi eq, %arg0, %c2_i32 : i32
    %85 = arith.extui %84 : i1 to i32
    %c0_i32_54 = arith.constant 0 : i32
    %86 = arith.cmpi ne, %85, %c0_i32_54 : i32
    scf.if %86 {
      %c0_55 = arith.constant 0 : index
      %c0_56 = arith.constant 0 : index
      %87 = vector.load %arg18[%c0_55, %c0_56] : memref<4x52xf32, #tpu.memory_space<vmem>>, vector<4x52xf32>
      %cst_57 = arith.constant 0.000000e+00 : f32
      %88 = vector.broadcast %cst_57 : f32 to vector<4x76xf32>
      %89 = tpu.concatenate %87, %88 in 1 : vector<4x52xf32>, vector<4x76xf32> -> vector<4x128xf32>
      %c0_58 = arith.constant 0 : index
      %c0_59 = arith.constant 0 : index
      %90 = vector.load %arg17[%c0_58, %c0_59] : memref<16x128xf32, #tpu.memory_space<vmem>>, vector<4x128xf32>
      tpu.vector_store %arg17[%c0_58, %c0_59], %89 {strides = array<i32>} : memref<16x128xf32, #tpu.memory_space<vmem>>, vector<4x128xf32>,
      %c0_60 = arith.constant 0 : index
      %c0_61 = arith.constant 0 : index
      %91 = vector.load %arg19[%c0_60, %c0_61] : memref<10x10xf32, #tpu.memory_space<vmem>>, vector<10x10xf32>
      %cst_62 = arith.constant 0.000000e+00 : f32
      %92 = vector.broadcast %cst_62 : f32 to vector<10x118xf32>
      %93 = tpu.concatenate %91, %92 in 1 : vector<10x10xf32>, vector<10x118xf32> -> vector<10x128xf32>
      %c4 = arith.constant 4 : index
      %c0_63 = arith.constant 0 : index
      %94 = vector.load %arg17[%c4, %c0_63] : memref<16x128xf32, #tpu.memory_space<vmem>>, vector<10x128xf32>
      tpu.vector_store %arg17[%c4, %c0_63], %93 {strides = array<i32>} : memref<16x128xf32, #tpu.memory_space<vmem>>, vector<10x128xf32>,
      %cst_64 = arith.constant 0.000000e+00 : f32
      %95 = vector.broadcast %cst_64 : f32 to vector<2x128xf32>
      %c14 = arith.constant 14 : index
      %c0_65 = arith.constant 0 : index
      %96 = vector.load %arg17[%c14, %c0_65] : memref<16x128xf32, #tpu.memory_space<vmem>>, vector<2x128xf32>
      tpu.vector_store %arg17[%c14, %c0_65], %95 {strides = array<i32>} : memref<16x128xf32, #tpu.memory_space<vmem>>, vector<2x128xf32>,
    } else {
    }
    return
  }
  func.func @transform_0(%arg0: i32) -> (i32, i32) {
    %c0_i32 = arith.constant 0 : i32
    %c0_i32_0 = arith.constant 0 : i32
    return %arg0, %c0_i32 : i32, i32
  }
  func.func @transform_1(%arg0: i32) -> (i32, i32) {
    %c0_i32 = arith.constant 0 : i32
    %c0_i32_0 = arith.constant 0 : i32
    return %arg0, %c0_i32 : i32, i32
  }
  func.func @transform_2(%arg0: i32) -> (i32, i32) {
    %c0_i32 = arith.constant 0 : i32
    %c0_i32_0 = arith.constant 0 : i32
    return %arg0, %c0_i32 : i32, i32
  }
  func.func @transform_3(%arg0: i32) -> (i32, i32) {
    %c0_i32 = arith.constant 0 : i32
    %c0_i32_0 = arith.constant 0 : i32
    return %arg0, %c0_i32 : i32, i32
  }
  func.func @transform_4(%arg0: i32) -> (i32, i32) {
    %c0_i32 = arith.constant 0 : i32
    %c0_i32_0 = arith.constant 0 : i32
    return %arg0, %c0_i32 : i32, i32
  }
  func.func @transform_5(%arg0: i32) -> (i32, i32) {
    %c0_i32 = arith.constant 0 : i32
    %c0_i32_0 = arith.constant 0 : i32
    return %arg0, %c0_i32 : i32, i32
  }
  func.func @transform_6(%arg0: i32) -> (i32, i32) {
    %c0_i32 = arith.constant 0 : i32
    %c0_i32_0 = arith.constant 0 : i32
    return %arg0, %c0_i32 : i32, i32
  }
  func.func @transform_7(%arg0: i32) -> (i32, i32) {
    %c0_i32 = arith.constant 0 : i32
    %c0_i32_0 = arith.constant 0 : i32
    %c0_i32_1 = arith.constant 0 : i32
    return %c0_i32, %c0_i32_0 : i32, i32
  }
  func.func @transform_8(%arg0: i32) -> (i32, i32) {
    %c0_i32 = arith.constant 0 : i32
    %c0_i32_0 = arith.constant 0 : i32
    %c0_i32_1 = arith.constant 0 : i32
    return %c0_i32, %c0_i32_0 : i32, i32
  }
  func.func @transform_9(%arg0: i32) -> (i32, i32) {
    %c0_i32 = arith.constant 0 : i32
    %c0_i32_0 = arith.constant 0 : i32
    %c0_i32_1 = arith.constant 0 : i32
    return %c0_i32, %c0_i32_0 : i32, i32
  }
  func.func @transform_10(%arg0: i32) -> (i32, i32) {
    %c0_i32 = arith.constant 0 : i32
    %c0_i32_0 = arith.constant 0 : i32
    %c0_i32_1 = arith.constant 0 : i32
    return %c0_i32, %c0_i32_0 : i32, i32
  }
  func.func @transform_11(%arg0: i32) -> (i32, i32) {
    %c0_i32 = arith.constant 0 : i32
    %c0_i32_0 = arith.constant 0 : i32
    %c0_i32_1 = arith.constant 0 : i32
    return %c0_i32, %c0_i32_0 : i32, i32
  }
  func.func @transform_12(%arg0: i32) -> (i32, i32) {
    %c0_i32 = arith.constant 0 : i32
    %c0_i32_0 = arith.constant 0 : i32
    %c0_i32_1 = arith.constant 0 : i32
    return %c0_i32, %c0_i32_0 : i32, i32
  }
  func.func @transform_13(%arg0: i32) -> (i32, i32) {
    %c0_i32 = arith.constant 0 : i32
    %c0_i32_0 = arith.constant 0 : i32
    %c0_i32_1 = arith.constant 0 : i32
    return %c0_i32, %c0_i32_0 : i32, i32
  }
  func.func @transform_14(%arg0: i32) -> (i32, i32) {
    %c0_i32 = arith.constant 0 : i32
    %c0_i32_0 = arith.constant 0 : i32
    %c0_i32_1 = arith.constant 0 : i32
    return %c0_i32, %c0_i32_0 : i32, i32
  }
  func.func @transform_15(%arg0: i32) -> (i32, i32) {
    %c0_i32 = arith.constant 0 : i32
    %c0_i32_0 = arith.constant 0 : i32
    %c0_i32_1 = arith.constant 0 : i32
    return %c0_i32, %c0_i32_0 : i32, i32
  }
  func.func @transform_16(%arg0: i32) -> (i32, i32) {
    %c0_i32 = arith.constant 0 : i32
    %c0_i32_0 = arith.constant 0 : i32
    %c0_i32_1 = arith.constant 0 : i32
    return %c0_i32, %c0_i32_0 : i32, i32
  }
}

</mosaic_0001>

<llo_original>
// kernel: sub.27
$region0: #{sub.27}
  #allocation0 [shape = 's32[1]{0}', space=sflag, size = 0x4, scoped, tag = 'scoped memory for sub.27']
  %s0 = inlined_call_operand.vmem [shape: f32[48,15], index: 0, kind: input, shape index: {}]
  %s1 = inlined_call_operand.vmem [shape: f32[48,15], index: 1, kind: input, shape index: {}]
  %s2 = inlined_call_operand.vmem [shape: f32[48,15], index: 2, kind: output, shape index: {}]
  %v3 = vld [vmem:[%s0] sm:$0xff]
  %v4 = vld [vmem:[%s1] sm:$0xff]
  %5 = xla_tuple %v3, %v4
  %6 = xla_tuple %5
  %v7 = vsub.f32 %v3, %v4
  %8 = xla_tuple %v7
  %9 = vst [vmem:[%s2] sm:$0xff] %v7
  %s10 = scalar_lea.vmem %s0, 8
  %v11 = vld [vmem:[%s10] sm:$0xff]
  %s12 = scalar_lea.vmem %s1, 8
  %v13 = vld [vmem:[%s12] sm:$0xff]
  %14 = xla_tuple %v11, %v13
  %15 = xla_tuple %14
  %v16 = vsub.f32 %v11, %v13
  %17 = xla_tuple %v16
  %s18 = scalar_lea.vmem %s2, 8
  %19 = vst [vmem:[%s18] sm:$0xff] %v16
  %s20 = scalar_lea.vmem %s0, 16
  %v21 = vld [vmem:[%s20] sm:$0xff]
  %s22 = scalar_lea.vmem %s1, 16
  %v23 = vld [vmem:[%s22] sm:$0xff]
  %24 = xla_tuple %v21, %v23
  %25 = xla_tuple %24
  %v26 = vsub.f32 %v21, %v23
  %27 = xla_tuple %v26
  %s28 = scalar_lea.vmem %s2, 16
  %29 = vst [vmem:[%s28] sm:$0xff] %v26
  %s30 = scalar_lea.vmem %s0, 24
  %v31 = vld [vmem:[%s30] sm:$0xff]
  %s32 = scalar_lea.vmem %s1, 24
  %v33 = vld [vmem:[%s32] sm:$0xff]
  %34 = xla_tuple %v31, %v33
  %35 = xla_tuple %34
  %v36 = vsub.f32 %v31, %v33
  %37 = xla_tuple %v36
  %s38 = scalar_lea.vmem %s2, 24
  %39 = vst [vmem:[%s38] sm:$0xff] %v36
  %s40 = scalar_lea.vmem %s0, 32
  %v41 = vld [vmem:[%s40] sm:$0xff]
  %s42 = scalar_lea.vmem %s1, 32
  %v43 = vld [vmem:[%s42] sm:$0xff]
  %44 = xla_tuple %v41, %v43
  %45 = xla_tuple %44
  %v46 = vsub.f32 %v41, %v43
  %47 = xla_tuple %v46
  %s48 = scalar_lea.vmem %s2, 32
  %49 = vst [vmem:[%s48] sm:$0xff] %v46
  %s50 = scalar_lea.vmem %s0, 40
  %v51 = vld [vmem:[%s50] sm:$0xff]
  %s52 = scalar_lea.vmem %s1, 40
  %v53 = vld [vmem:[%s52] sm:$0xff]
  %54 = xla_tuple %v51, %v53
  %55 = xla_tuple %54
  %v56 = vsub.f32 %v51, %v53
  %57 = xla_tuple %v56
  %s58 = scalar_lea.vmem %s2, 40
  %59 = vst [vmem:[%s58] sm:$0xff] %v56

// kernel: sub.28
$region0: #{sub.28}
  #allocation0 [shape = 's32[1]{0}', space=sflag, size = 0x4, scoped, tag = 'scoped memory for sub.28']
  %s0 = inlined_call_operand.vmem [shape: f32[48,17], index: 0, kind: input, shape index: {}]
  %s1 = inlined_call_operand.vmem [shape: f32[48,17], index: 1, kind: input, shape index: {}]
  %s2 = inlined_call_operand.vmem [shape: f32[48,17], index: 2, kind: output, shape index: {}]
  %v3 = vld [vmem:[%s0] sm:$0xff]
  %v4 = vld [vmem:[%s1] sm:$0xff]
  %5 = xla_tuple %v3, %v4
  %6 = xla_tuple %5
  %v7 = vsub.f32 %v3, %v4
  %8 = xla_tuple %v7
  %9 = vst [vmem:[%s2] sm:$0xff] %v7
  %s10 = scalar_lea.vmem %s0, 8
  %v11 = vld [vmem:[%s10] sm:$0xff]
  %s12 = scalar_lea.vmem %s1, 8
  %v13 = vld [vmem:[%s12] sm:$0xff]
  %14 = xla_tuple %v11, %v13
  %15 = xla_tuple %14
  %v16 = vsub.f32 %v11, %v13
  %17 = xla_tuple %v16
  %s18 = scalar_lea.vmem %s2, 8
  %19 = vst [vmem:[%s18] sm:$0xff] %v16
  %s20 = scalar_lea.vmem %s0, 16
  %v21 = vld [vmem:[%s20] sm:$0xff]
  %s22 = scalar_lea.vmem %s1, 16
  %v23 = vld [vmem:[%s22] sm:$0xff]
  %24 = xla_tuple %v21, %v23
  %25 = xla_tuple %24
  %v26 = vsub.f32 %v21, %v23
  %27 = xla_tuple %v26
  %s28 = scalar_lea.vmem %s2, 16
  %29 = vst [vmem:[%s28] sm:$0xff] %v26
  %s30 = scalar_lea.vmem %s0, 24
  %v31 = vld [vmem:[%s30] sm:$0xff]
  %s32 = scalar_lea.vmem %s1, 24
  %v33 = vld [vmem:[%s32] sm:$0xff]
  %34 = xla_tuple %v31, %v33
  %35 = xla_tuple %34
  %v36 = vsub.f32 %v31, %v33
  %37 = xla_tuple %v36
  %s38 = scalar_lea.vmem %s2, 24
  %39 = vst [vmem:[%s38] sm:$0xff] %v36
  %s40 = scalar_lea.vmem %s0, 32
  %v41 = vld [vmem:[%s40] sm:$0xff]
  %s42 = scalar_lea.vmem %s1, 32
  %v43 = vld [vmem:[%s42] sm:$0xff]
  %44 = xla_tuple %v41, %v43
  %45 = xla_tuple %44
  %v46 = vsub.f32 %v41, %v43
  %47 = xla_tuple %v46
  %s48 = scalar_lea.vmem %s2, 32
  %49 = vst [vmem:[%s48] sm:$0xff] %v46
  %s50 = scalar_lea.vmem %s0, 40
  %v51 = vld [vmem:[%s50] sm:$0xff]
  %s52 = scalar_lea.vmem %s1, 40
  %v53 = vld [vmem:[%s52] sm:$0xff]
  %54 = xla_tuple %v51, %v53
  %55 = xla_tuple %54
  %v56 = vsub.f32 %v51, %v53
  %57 = xla_tuple %v56
  %s58 = scalar_lea.vmem %s2, 40
  %59 = vst [vmem:[%s58] sm:$0xff] %v56

// kernel: sub.29
$region0: #{sub.29}
  #allocation0 [shape = 's32[1]{0}', space=sflag, size = 0x4, scoped, tag = 'scoped memory for sub.29']
  %s0 = inlined_call_operand.vmem [shape: f32[48,20], index: 0, kind: input, shape index: {}]
  %s1 = inlined_call_operand.vmem [shape: f32[48,20], index: 1, kind: input, shape index: {}]
  %s2 = inlined_call_operand.vmem [shape: f32[48,20], index: 2, kind: output, shape index: {}]
  %v3 = vld [vmem:[%s0] sm:$0xff]
  %v4 = vld [vmem:[%s1] sm:$0xff]
  %5 = xla_tuple %v3, %v4
  %6 = xla_tuple %5
  %v7 = vsub.f32 %v3, %v4
  %8 = xla_tuple %v7
  %9 = vst [vmem:[%s2] sm:$0xff] %v7
  %s10 = scalar_lea.vmem %s0, 8
  %v11 = vld [vmem:[%s10] sm:$0xff]
  %s12 = scalar_lea.vmem %s1, 8
  %v13 = vld [vmem:[%s12] sm:$0xff]
  %14 = xla_tuple %v11, %v13
  %15 = xla_tuple %14
  %v16 = vsub.f32 %v11, %v13
  %17 = xla_tuple %v16
  %s18 = scalar_lea.vmem %s2, 8
  %19 = vst [vmem:[%s18] sm:$0xff] %v16
  %s20 = scalar_lea.vmem %s0, 16
  %v21 = vld [vmem:[%s20] sm:$0xff]
  %s22 = scalar_lea.vmem %s1, 16
  %v23 = vld [vmem:[%s22] sm:$0xff]
  %24 = xla_tuple %v21, %v23
  %25 = xla_tuple %24
  %v26 = vsub.f32 %v21, %v23
  %27 = xla_tuple %v26
  %s28 = scalar_lea.vmem %s2, 16
  %29 = vst [vmem:[%s28] sm:$0xff] %v26
  %s30 = scalar_lea.vmem %s0, 24
  %v31 = vld [vmem:[%s30] sm:$0xff]
  %s32 = scalar_lea.vmem %s1, 24
  %v33 = vld [vmem:[%s32] sm:$0xff]
  %34 = xla_tuple %v31, %v33
  %35 = xla_tuple %34
  %v36 = vsub.f32 %v31, %v33
  %37 = xla_tuple %v36
  %s38 = scalar_lea.vmem %s2, 24
  %39 = vst [vmem:[%s38] sm:$0xff] %v36
  %s40 = scalar_lea.vmem %s0, 32
  %v41 = vld [vmem:[%s40] sm:$0xff]
  %s42 = scalar_lea.vmem %s1, 32
  %v43 = vld [vmem:[%s42] sm:$0xff]
  %44 = xla_tuple %v41, %v43
  %45 = xla_tuple %44
  %v46 = vsub.f32 %v41, %v43
  %47 = xla_tuple %v46
  %s48 = scalar_lea.vmem %s2, 32
  %49 = vst [vmem:[%s48] sm:$0xff] %v46
  %s50 = scalar_lea.vmem %s0, 40
  %v51 = vld [vmem:[%s50] sm:$0xff]
  %s52 = scalar_lea.vmem %s1, 40
  %v53 = vld [vmem:[%s52] sm:$0xff]
  %54 = xla_tuple %v51, %v53
  %55 = xla_tuple %54
  %v56 = vsub.f32 %v51, %v53
  %57 = xla_tuple %v56
  %s58 = scalar_lea.vmem %s2, 40
  %59 = vst [vmem:[%s58] sm:$0xff] %v56

// kernel: performance_evaluator_forward.3
$region0: #{performance_evaluator_forward.3}
  #allocation0 [shape = 'u32[]', space=smem, size = 0x4, offset = 0x4, fixed_abs, tag = 'smem constant byte address 0x4 - core index']
  #allocation1 [shape = 'u32[144,128]{1,0:T(1,128)}', space=vmem, size = 0x12000, scoped, tag = 'internal scratch']
  #allocation2 [shape = 'f32[1,8]{1,0:T(1,128)}', space=vmem, size = 0x200, scoped, tag = 'scratch operand']
  %s0 = inlined_call_operand.vmem [shape: s32[48,1], index: 0, kind: input, shape index: {}]
  %s1 = inlined_call_operand.vmem [shape: s32[48,1], index: 1, kind: input, shape index: {}]
  %s2 = inlined_call_operand.vmem [shape: f32[48,1], index: 2, kind: input, shape index: {}]
  %s3 = inlined_call_operand.vmem [shape: f32[48,15], index: 3, kind: input, shape index: {}]
  %s4 = inlined_call_operand.vmem [shape: f32[48,17], index: 4, kind: input, shape index: {}]
  %s5 = inlined_call_operand.vmem [shape: f32[48,20], index: 5, kind: input, shape index: {}]
  %s6 = inlined_call_operand.vmem [shape: f32[1,128], index: 6, kind: output, shape index: {}]
  %s7 = sld [smem:[#allocation0]]
  $region65: #{performance_evaluator_forward.3} parent=0
    _
  %s9 = ssub.s32 1, %s7
  %s10 = scalar_select 0, %s9, %s7
  loop: start=0, step=1, limit=5
  $region2: #{performance_evaluator_forward.3} parent=0 // loop_pre_header
    _
  $region3: #{performance_evaluator_forward.3} parent=0 // loop_header
    %s12 = sphi 0, %s16
    %p13 = scmp.ge.s32.totalorder %s12, 5
    %s22 = sphi 0, %s24
    %s25 = sphi 0, %s22
    %s26 = sphi 0, %s25
    %s42 = sphi 0, %s26
    %s48 = sphi 0, %s50
    %s51 = sphi 0, %s48
    %s52 = sphi 0, %s51
    %s68 = sphi 0, %s52
    %s74 = sphi 0, %s76
    %s77 = sphi 0, %s74
    %s78 = sphi 0, %s77
    %s94 = sphi 0, %s78
    %s100 = sphi 0, %s102
    %s103 = sphi 0, %s100
    %s104 = sphi 0, %s103
    %s120 = sphi 0, %s104
    %s126 = sphi 0, %s128
    %s129 = sphi 0, %s126
    %s130 = sphi 0, %s129
    %s146 = sphi 0, %s130
    %s152 = sphi 0, %s154
    %s155 = sphi 0, %s152
    %s156 = sphi 0, %s155
    %s172 = sphi 0, %s156
    %s176 = sphi 0, %s176
    %s178 = sphi 0, %s176
    %s179 = sphi 0, %s178
    %s193 = sphi 0, %s179
  $region4: #{performance_evaluator_forward.3} parent=0 // loop_header_branch
    %15 = sbr.rel (%p13) target = $region8
  $region5: #{performance_evaluator_forward.3} parent=0 // loop_body
    %s17 = ssub.s32 %s12, 1
    %s18 = ssub.s32 %s12, 2
    %s19 = sadd.s32 %s12, 1
    %s20 = ssub.s32 %s12, %s19
    %p21 = scmp.eq.s32.totalorder %s20, 0
    %s23 = sadd.s32 %s22, 1
    %s24 = scalar_select %p21, %s22, %s23
    %p27 = pneg %p21
    %p28 = scmp.eq.s32.totalorder %s12, 2
    %p29 = por %p27, %p28
    %p30 = scmp.ne.s32.totalorder %s22, %s25
    %p31 = scmp.eq.s32.totalorder %s12, 0
    %p32 = por %p30, %p31
    %p33 = scmp.ne.s32.totalorder %s22, %s25
    %p34 = scmp.eq.s32.totalorder %s17, 2
    %p35 = por %p33, %p34
    %p36 = scmp.ne.s32.totalorder %s25, %s26
    %p37 = scmp.eq.s32.totalorder %s17, 0
    %p38 = por %p36, %p37
    %p39 = scmp.ne.s32.totalorder %s25, %s26
    %p40 = scmp.eq.s32.totalorder %s18, 2
    %p41 = por %p39, %p40
    %p43 = scmp.ne.s32.totalorder %s26, %s42
    %p44 = scmp.eq.s32.totalorder %s18, 0
    %p45 = por %p43, %p44
    %s46 = ssub.s32 %s12, %s19
    %p47 = scmp.eq.s32.totalorder %s46, 0
    %s49 = sadd.s32 %s48, 1
    %s50 = scalar_select %p47, %s48, %s49
    %p53 = pneg %p47
    %p54 = scmp.eq.s32.totalorder %s12, 2
    %p55 = por %p53, %p54
    %p56 = scmp.ne.s32.totalorder %s48, %s51
    %p57 = scmp.eq.s32.totalorder %s12, 0
    %p58 = por %p56, %p57
    %p59 = scmp.ne.s32.totalorder %s48, %s51
    %p60 = scmp.eq.s32.totalorder %s17, 2
    %p61 = por %p59, %p60
    %p62 = scmp.ne.s32.totalorder %s51, %s52
    %p63 = scmp.eq.s32.totalorder %s17, 0
    %p64 = por %p62, %p63
    %p65 = scmp.ne.s32.totalorder %s51, %s52
    %p66 = scmp.eq.s32.totalorder %s18, 2
    %p67 = por %p65, %p66
    %p69 = scmp.ne.s32.totalorder %s52, %s68
    %p70 = scmp.eq.s32.totalorder %s18, 0
    %p71 = por %p69, %p70
    %s72 = ssub.s32 %s12, %s19
    %p73 = scmp.eq.s32.totalorder %s72, 0
    %s75 = sadd.s32 %s74, 1
    %s76 = scalar_select %p73, %s74, %s75
    %p79 = pneg %p73
    %p80 = scmp.eq.s32.totalorder %s12, 2
    %p81 = por %p79, %p80
    %p82 = scmp.ne.s32.totalorder %s74, %s77
    %p83 = scmp.eq.s32.totalorder %s12, 0
    %p84 = por %p82, %p83
    %p85 = scmp.ne.s32.totalorder %s74, %s77
    %p86 = scmp.eq.s32.totalorder %s17, 2
    %p87 = por %p85, %p86
    %p88 = scmp.ne.s32.totalorder %s77, %s78
    %p89 = scmp.eq.s32.totalorder %s17, 0
    %p90 = por %p88, %p89
    %p91 = scmp.ne.s32.totalorder %s77, %s78
    %p92 = scmp.eq.s32.totalorder %s18, 2
    %p93 = por %p91, %p92
    %p95 = scmp.ne.s32.totalorder %s78, %s94
    %p96 = scmp.eq.s32.totalorder %s18, 0
    %p97 = por %p95, %p96
    %s98 = ssub.s32 %s12, %s19
    %p99 = scmp.eq.s32.totalorder %s98, 0
    %s101 = sadd.s32 %s100, 1
    %s102 = scalar_select %p99, %s100, %s101
    %p105 = pneg %p99
    %p106 = scmp.eq.s32.totalorder %s12, 2
    %p107 = por %p105, %p106
    %p108 = scmp.ne.s32.totalorder %s100, %s103
    %p109 = scmp.eq.s32.totalorder %s12, 0
    %p110 = por %p108, %p109
    %p111 = scmp.ne.s32.totalorder %s100, %s103
    %p112 = scmp.eq.s32.totalorder %s17, 2
    %p113 = por %p111, %p112
    %p114 = scmp.ne.s32.totalorder %s103, %s104
    %p115 = scmp.eq.s32.totalorder %s17, 0
    %p116 = por %p114, %p115
    %p117 = scmp.ne.s32.totalorder %s103, %s104
    %p118 = scmp.eq.s32.totalorder %s18, 2
    %p119 = por %p117, %p118
    %p121 = scmp.ne.s32.totalorder %s104, %s120
    %p122 = scmp.eq.s32.totalorder %s18, 0
    %p123 = por %p121, %p122
    %s124 = ssub.s32 %s12, %s19
    %p125 = scmp.eq.s32.totalorder %s124, 0
    %s127 = sadd.s32 %s126, 1
    %s128 = scalar_select %p125, %s126, %s127
    %p131 = pneg %p125
    %p132 = scmp.eq.s32.totalorder %s12, 2
    %p133 = por %p131, %p132
    %p134 = scmp.ne.s32.totalorder %s126, %s129
    %p135 = scmp.eq.s32.totalorder %s12, 0
    %p136 = por %p134, %p135
    %p137 = scmp.ne.s32.totalorder %s126, %s129
    %p138 = scmp.eq.s32.totalorder %s17, 2
    %p139 = por %p137, %p138
    %p140 = scmp.ne.s32.totalorder %s129, %s130
    %p141 = scmp.eq.s32.totalorder %s17, 0
    %p142 = por %p140, %p141
    %p143 = scmp.ne.s32.totalorder %s129, %s130
    %p144 = scmp.eq.s32.totalorder %s18, 2
    %p145 = por %p143, %p144
    %p147 = scmp.ne.s32.totalorder %s130, %s146
    %p148 = scmp.eq.s32.totalorder %s18, 0
    %p149 = por %p147, %p148
    %s150 = ssub.s32 %s12, %s19
    %p151 = scmp.eq.s32.totalorder %s150, 0
    %s153 = sadd.s32 %s152, 1
    %s154 = scalar_select %p151, %s152, %s153
    %p157 = pneg %p151
    %p158 = scmp.eq.s32.totalorder %s12, 2
    %p159 = por %p157, %p158
    %p160 = scmp.ne.s32.totalorder %s152, %s155
    %p161 = scmp.eq.s32.totalorder %s12, 0
    %p162 = por %p160, %p161
    %p163 = scmp.ne.s32.totalorder %s152, %s155
    %p164 = scmp.eq.s32.totalorder %s17, 2
    %p165 = por %p163, %p164
    %p166 = scmp.ne.s32.totalorder %s155, %s156
    %p167 = scmp.eq.s32.totalorder %s17, 0
    %p168 = por %p166, %p167
    %p169 = scmp.ne.s32.totalorder %s155, %s156
    %p170 = scmp.eq.s32.totalorder %s18, 2
    %p171 = por %p169, %p170
    %p173 = scmp.ne.s32.totalorder %s156, %s172
    %p174 = scmp.eq.s32.totalorder %s18, 0
    %p175 = por %p173, %p174
    %s177 = sadd.s32 %s176, 1
    %p180 = scmp.eq.s32.totalorder %s12, 2
    %p181 = scmp.ne.s32.totalorder %s176, %s178
    %p182 = scmp.eq.s32.totalorder %s12, 0
    %p183 = por %p181, %p182
    %p184 = scmp.ne.s32.totalorder %s176, %s178
    %p185 = scmp.eq.s32.totalorder %s17, 2
    %p186 = por %p184, %p185
    %p187 = scmp.ne.s32.totalorder %s178, %s179
    %p188 = scmp.eq.s32.totalorder %s17, 0
    %p189 = por %p187, %p188
    %p190 = scmp.ne.s32.totalorder %s178, %s179
    %p191 = scmp.eq.s32.totalorder %s18, 2
    %p192 = por %p190, %p191
    %p194 = scmp.ne.s32.totalorder %s179, %s193
    %p195 = scmp.eq.s32.totalorder %s18, 0
    %p196 = por %p194, %p195
    %p197 = scmp.le.s32.totalorder 1, %s12
    %p198 = scmp.lt.s32.totalorder %s12, 4
    %p199 = pnand %p197, %p198
    %p200 = pneg %p199
    // Predicated region
    $region9: #{performance_evaluator_forward.3} parent=5 // pred_check
      _
    $region10: #{performance_evaluator_forward.3} parent=5 // pred_check_branch
      %202 = sbr.rel (%p199) target = $region12
    $region11: #{performance_evaluator_forward.3} parent=5 // pred_region
      %s203 = ssub.s32 %s12, 1
    $region12: #{performance_evaluator_forward.3} parent=5 // pred_fallthru
      _
    %p204 = scmp.lt.s32.totalorder %s12, 3
    // Predicated region
    $region13: #{performance_evaluator_forward.3} parent=5 // pred_check
      %p205 = pneg %p204
    $region14: #{performance_evaluator_forward.3} parent=5 // pred_check_branch
      %207 = sbr.rel (%p205) target = $region16
    $region15: #{performance_evaluator_forward.3} parent=5 // pred_region
      // Predicated region
      $region17: #{performance_evaluator_forward.3} parent=15 // pred_check
        %p208 = pneg %p32
      $region18: #{performance_evaluator_forward.3} parent=15 // pred_check_branch
        %210 = sbr.rel (%p208) target = $region20
      $region19: #{performance_evaluator_forward.3} parent=15 // pred_region
        %s211 = smul.u32 2, %s12
        %p212 = scmp.lt.s32.totalorder %s211, 5
        %s213 = scalar_select %p212, %s211, 5
        %s214 = smul.addr %s213, 8
        %s215 = scalar_lea.vmem %s0, %s214
        %s216 = smul.u32 2, %s12
      $region20: #{performance_evaluator_forward.3} parent=15 // pred_fallthru
        _
      // Predicated region
      $region21: #{performance_evaluator_forward.3} parent=15 // pred_check
        %p217 = pneg %p58
      $region22: #{performance_evaluator_forward.3} parent=15 // pred_check_branch
        %219 = sbr.rel (%p217) target = $region24
      $region23: #{performance_evaluator_forward.3} parent=15 // pred_region
        %s220 = smul.u32 2, %s12
        %p221 = scmp.lt.s32.totalorder %s220, 5
        %s222 = scalar_select %p221, %s220, 5
        %s223 = smul.addr %s222, 8
        %s224 = scalar_lea.vmem %s1, %s223
        %s225 = smul.u32 2, %s12
      $region24: #{performance_evaluator_forward.3} parent=15 // pred_fallthru
        _
      // Predicated region
      $region25: #{performance_evaluator_forward.3} parent=15 // pred_check
        %p226 = pneg %p84
      $region26: #{performance_evaluator_forward.3} parent=15 // pred_check_branch
        %228 = sbr.rel (%p226) target = $region28
      $region27: #{performance_evaluator_forward.3} parent=15 // pred_region
        %s229 = smul.u32 2, %s12
        %p230 = scmp.lt.s32.totalorder %s229, 5
        %s231 = scalar_select %p230, %s229, 5
        %s232 = smul.addr %s231, 8
        %s233 = scalar_lea.vmem %s2, %s232
        %s234 = smul.u32 2, %s12
      $region28: #{performance_evaluator_forward.3} parent=15 // pred_fallthru
        _
      // Predicated region
      $region29: #{performance_evaluator_forward.3} parent=15 // pred_check
        %p235 = pneg %p110
      $region30: #{performance_evaluator_forward.3} parent=15 // pred_check_branch
        %237 = sbr.rel (%p235) target = $region32
      $region31: #{performance_evaluator_forward.3} parent=15 // pred_region
        %s238 = smul.u32 2, %s12
        %p239 = scmp.lt.s32.totalorder %s238, 5
        %s240 = scalar_select %p239, %s238, 5
        %s241 = smul.addr %s240, 8
        %s242 = scalar_lea.vmem %s3, %s241
        %s243 = smul.u32 2, %s12
      $region32: #{performance_evaluator_forward.3} parent=15 // pred_fallthru
        _
      // Predicated region
      $region33: #{performance_evaluator_forward.3} parent=15 // pred_check
        %p244 = pneg %p136
      $region34: #{performance_evaluator_forward.3} parent=15 // pred_check_branch
        %246 = sbr.rel (%p244) target = $region36
      $region35: #{performance_evaluator_forward.3} parent=15 // pred_region
        %s247 = smul.u32 2, %s12
        %p248 = scmp.lt.s32.totalorder %s247, 5
        %s249 = scalar_select %p248, %s247, 5
        %s250 = smul.addr %s249, 8
        %s251 = scalar_lea.vmem %s4, %s250
        %s252 = smul.u32 2, %s12
      $region36: #{performance_evaluator_forward.3} parent=15 // pred_fallthru
        _
      // Predicated region
      $region37: #{performance_evaluator_forward.3} parent=15 // pred_check
        %p253 = pneg %p162
      $region38: #{performance_evaluator_forward.3} parent=15 // pred_check_branch
        %255 = sbr.rel (%p253) target = $region40
      $region39: #{performance_evaluator_forward.3} parent=15 // pred_region
        %s256 = smul.u32 2, %s12
        %p257 = scmp.lt.s32.totalorder %s256, 5
        %s258 = scalar_select %p257, %s256, 5
        %s259 = smul.addr %s258, 8
        %s260 = scalar_lea.vmem %s5, %s259
        %s261 = smul.u32 2, %s12
      $region40: #{performance_evaluator_forward.3} parent=15 // pred_fallthru
        _
    $region16: #{performance_evaluator_forward.3} parent=5 // pred_fallthru
      _
    %p262 = scmp.le.s32.totalorder 1, %s12
    %p263 = scmp.lt.s32.totalorder %s12, 4
    %p264 = pnand %p262, %p263
    %p265 = pneg %p264
    // Predicated region
    $region41: #{performance_evaluator_forward.3} parent=5 // pred_check
      _
    $region42: #{performance_evaluator_forward.3} parent=5 // pred_check_branch
      %267 = sbr.rel (%p264) target = $region44
    $region43: #{performance_evaluator_forward.3} parent=5 // pred_region
      %s268 = ssub.s32 %s12, 1
      %s269 = smul.u32 2, %s17
      %p270 = scmp.lt.s32.totalorder %s269, 5
      %s271 = scalar_select %p270, %s269, 5
      %s272 = smul.addr %s271, 8
      %s273 = scalar_lea.vmem %s0, %s272
      %p274 = pneg %p38
      %p275 = pneg %p35
      %s276 = smul.u32 2, %s17
      %p277 = scmp.lt.s32.totalorder %s276, 5
      %s278 = scalar_select %p277, %s276, 5
      %s279 = smul.addr %s278, 8
      %s280 = scalar_lea.vmem %s1, %s279
      %p281 = pneg %p64
      %p282 = pneg %p61
      %s283 = smul.u32 2, %s17
      %p284 = scmp.lt.s32.totalorder %s283, 5
      %s285 = scalar_select %p284, %s283, 5
      %s286 = smul.addr %s285, 8
      %s287 = scalar_lea.vmem %s2, %s286
      %p288 = pneg %p90
      %p289 = pneg %p87
      %s290 = smul.u32 2, %s17
      %p291 = scmp.lt.s32.totalorder %s290, 5
      %s292 = scalar_select %p291, %s290, 5
      %s293 = smul.addr %s292, 8
      %s294 = scalar_lea.vmem %s3, %s293
      %p295 = pneg %p116
      %p296 = pneg %p113
      %s297 = smul.u32 2, %s17
      %p298 = scmp.lt.s32.totalorder %s297, 5
      %s299 = scalar_select %p298, %s297, 5
      %s300 = smul.addr %s299, 8
      %s301 = scalar_lea.vmem %s4, %s300
      %p302 = pneg %p142
      %p303 = pneg %p139
      %s304 = smul.u32 2, %s17
      %p305 = scmp.lt.s32.totalorder %s304, 5
      %s306 = scalar_select %p305, %s304, 5
      %s307 = smul.addr %s306, 8
      %s308 = scalar_lea.vmem %s5, %s307
      %p309 = pneg %p168
      %p310 = pneg %p165
      %p311 = pneg %p189
      %p312 = pneg %p186
      %s313 = smul.u32 2, %s17
      %p314 = scmp.lt.s32.totalorder %s313, 5
      %s315 = scalar_select %p314, %s313, 5
      %s316 = smul.addr %s315, 8
      %s317 = scalar_lea.vmem %s0, %s316
      %s318 = smul.u32 2, %s17
      %s319 = smul.u32 2, %s17
      %p320 = scmp.lt.s32.totalorder %s319, 5
      %s321 = scalar_select %p320, %s319, 5
      %s322 = smul.addr %s321, 8
      %s323 = scalar_lea.vmem %s1, %s322
      %s324 = smul.u32 2, %s17
      %s325 = smul.u32 2, %s17
      %p326 = scmp.lt.s32.totalorder %s325, 5
      %s327 = scalar_select %p326, %s325, 5
      %s328 = smul.addr %s327, 8
      %s329 = scalar_lea.vmem %s2, %s328
      %s330 = smul.u32 2, %s17
      %s331 = smul.u32 2, %s17
      %p332 = scmp.lt.s32.totalorder %s331, 5
      %s333 = scalar_select %p332, %s331, 5
      %s334 = smul.addr %s333, 8
      %s335 = scalar_lea.vmem %s3, %s334
      %s336 = smul.u32 2, %s17
      %s337 = smul.u32 2, %s17
      %p338 = scmp.lt.s32.totalorder %s337, 5
      %s339 = scalar_select %p338, %s337, 5
      %s340 = smul.addr %s339, 8
      %s341 = scalar_lea.vmem %s4, %s340
      %s342 = smul.u32 2, %s17
      %s343 = smul.u32 2, %s17
      %p344 = scmp.lt.s32.totalorder %s343, 5
      %s345 = scalar_select %p344, %s343, 5
      %s346 = smul.addr %s345, 8
      %s347 = scalar_lea.vmem %s5, %s346
      %s348 = smul.u32 2, %s17
      %p349 = scmp.eq.s32.totalorder %s17, 0
      // Predicated region
      $region45: #{performance_evaluator_forward.3} parent=43 // pred_check
        %p350 = pneg %p349
      $region46: #{performance_evaluator_forward.3} parent=43 // pred_check_branch
        %352 = sbr.rel (%p350) target = $region48
      $region47: #{performance_evaluator_forward.3} parent=43 // pred_region
        %vm353 = vcmask 57344
        %354 = vst.msk [vmem:[#allocation2] sm:$0x1] %vm353, 0.0
      $region48: #{performance_evaluator_forward.3} parent=43 // pred_fallthru
        _
      %v355 = vld [vmem:[%s329] sm:$0xff]
      %v356 = vld [vmem:[%s329 + $0x8] sm:$0xff]
      %v357 = vld [vmem:[%s317] sm:$0xff]
      %v358 = vld [vmem:[%s317 + $0x8] sm:$0xff]
      %v359 = vld [vmem:[%s323] sm:$0xff]
      %v360 = vld [vmem:[%s323 + $0x8] sm:$0xff]
      %vm361 = vcmp.ne.s32.totalorder %v357, %v359
      %vm362 = vcmp.ne.s32.totalorder %v358, %v360
      %v363 = vsel %vm361, 1, 0
      %v364 = vsel %vm362, 1, 0
      %v365 = vcvt.s32.f32 %v363
      %v366 = vcvt.s32.f32 %v364
      %v367 = vmul.f32 %v355, %v365
      %v368 = vmul.f32 %v356, %v366
      %v369 = vld [vmem:[%s335] sm:$0xff]
      %v370 = vld [vmem:[%s335 + $0x8] sm:$0xff]
      %v371 = vmul.f32 %v369, %v369
      %v372 = vmul.f32 %v370, %v370
      %vm373 = vcmask 121856
      %v374 = vsel %vm373, %v371, 0.0
      %375 = vadd.xlane.f32.xlu0 %v374
      %v376 = vpop.xlane.xlu0 %375
      %v377 = vsel %vm373, %v372, 0.0
      %378 = vadd.xlane.f32.xlu0 %v377
      %v379 = vpop.xlane.xlu0 %378
      %v380 = vrsqrt.pop %v376
      %v381 = vmul.f32 %v376, %v380
      %vm382 = vcmp.eq.f32.partialorder %v376, inf
      %v383 = vsel %vm382, %v376, %v381
      %vm384 = vcmp.eq.f32.partialorder %v376, 0.0
      %v385 = vand.u32 %v376, 2147483648
      %v386 = vsel %vm384, %v385, %v383
      %v387 = vrsqrt.pop %v379
      %v388 = vmul.f32 %v379, %v387
      %vm389 = vcmp.eq.f32.partialorder %v379, inf
      %v390 = vsel %vm389, %v379, %v388
      %vm391 = vcmp.eq.f32.partialorder %v379, 0.0
      %v392 = vand.u32 %v379, 2147483648
      %v393 = vsel %vm391, %v392, %v390
      %v394 = vld [vmem:[%s341] sm:$0xff]
      %v395 = vld [vmem:[%s341 + $0x8] sm:$0xff]
      %v396 = vmul.f32 %v394, %v394
      %v397 = vmul.f32 %v395, %v395
      %vm398 = vcmask 138240
      %v399 = vsel %vm398, %v396, 0.0
      %400 = vadd.xlane.f32.xlu0 %v399
      %v401 = vpop.xlane.xlu0 %400
      %v402 = vsel %vm398, %v397, 0.0
      %403 = vadd.xlane.f32.xlu0 %v402
      %v404 = vpop.xlane.xlu0 %403
      %v405 = vrsqrt.pop %v401
      %v406 = vmul.f32 %v401, %v405
      %vm407 = vcmp.eq.f32.partialorder %v401, inf
      %v408 = vsel %vm407, %v401, %v406
      %vm409 = vcmp.eq.f32.partialorder %v401, 0.0
      %v410 = vand.u32 %v401, 2147483648
      %v411 = vsel %vm409, %v410, %v408
      %v412 = vrsqrt.pop %v404
      %v413 = vmul.f32 %v404, %v412
      %vm414 = vcmp.eq.f32.partialorder %v404, inf
      %v415 = vsel %vm414, %v404, %v413
      %vm416 = vcmp.eq.f32.partialorder %v404, 0.0
      %v417 = vand.u32 %v404, 2147483648
      %v418 = vsel %vm416, %v417, %v415
      %v419 = vld [vmem:[%s347] sm:$0xff]
      %v420 = vld [vmem:[%s347 + $0x8] sm:$0xff]
      %v421 = vmul.f32 %v419, %v419
      %v422 = vmul.f32 %v420, %v420
      %vm423 = vcmask 162816
      %v424 = vsel %vm423, %v421, 0.0
      %425 = vadd.xlane.f32.xlu0 %v424
      %v426 = vpop.xlane.xlu0 %425
      %v427 = vsel %vm423, %v422, 0.0
      %428 = vadd.xlane.f32.xlu0 %v427
      %v429 = vpop.xlane.xlu0 %428
      %v430 = vrsqrt.pop %v426
      %v431 = vmul.f32 %v426, %v430
      %vm432 = vcmp.eq.f32.partialorder %v426, inf
      %v433 = vsel %vm432, %v426, %v431
      %vm434 = vcmp.eq.f32.partialorder %v426, 0.0
      %v435 = vand.u32 %v426, 2147483648
      %v436 = vsel %vm434, %v435, %v433
      %v437 = vrsqrt.pop %v429
      %v438 = vmul.f32 %v429, %v437
      %vm439 = vcmp.eq.f32.partialorder %v429, inf
      %v440 = vsel %vm439, %v429, %v438
      %vm441 = vcmp.eq.f32.partialorder %v429, 0.0
      %v442 = vand.u32 %v429, 2147483648
      %v443 = vsel %vm441, %v442, %v440
      %v444 = vmul.f32 %v367, %v386
      %v445 = vmul.f32 %v368, %v393
      %v446 = vmul.f32 %v367, %v411
      %v447 = vmul.f32 %v368, %v418
      %v448 = vmul.f32 %v367, %v436
      %v449 = vmul.f32 %v368, %v443
      %452 = vrot.lane.b32.xlu0 %v367, 1
      %v453 = vpop.permute.xlu0 %452
      %454 = vrot.lane.b32.xlu0 %v368, 1
      %v455 = vpop.permute.xlu0 %454
      %460 = vrot.lane.b32.xlu0 %v444, 2
      %v461 = vpop.permute.xlu0 %460
      %462 = vrot.lane.b32.xlu0 %v445, 2
      %v463 = vpop.permute.xlu0 %462
      %468 = vrot.lane.b32.xlu0 %v446, 3
      %v469 = vpop.permute.xlu0 %468
      %470 = vrot.lane.b32.xlu0 %v447, 3
      %v471 = vpop.permute.xlu0 %470
      %476 = vrot.lane.b32.xlu0 %v448, 4
      %v477 = vpop.permute.xlu0 %476
      %478 = vrot.lane.b32.xlu0 %v449, 4
      %v479 = vpop.permute.xlu0 %478
      %vm482 = vcmask 7168
      %v483 = vsel %vm482, %v355, %v453
      %v484 = vsel %vm482, %v356, %v455
      %vm485 = vcmask 15360
      %v486 = vsel %vm485, %v483, %v461
      %v487 = vsel %vm485, %v484, %v463
      %vm488 = vcmask 23552
      %v489 = vsel %vm488, %v486, %v469
      %v490 = vsel %vm488, %v487, %v471
      %vm491 = vcmask 31744
      %v492 = vsel %vm491, %v489, %v477
      %v493 = vsel %vm491, %v490, %v479
      %vm494 = vcmask 39936
      %v495 = vsel %vm494, %v492, 0.0
      %v496 = vsel %vm494, %v493, 0.0
      %vm497 = vcmask 48128
      %v498 = vsel %vm497, %v495, 0.0
      %v499 = vsel %vm497, %v496, 0.0
      %vm500 = vcmask 56320
      %v501 = vsel %vm500, %v498, 0.0
      %v502 = vsel %vm500, %v499, 0.0
      %v503 = vld [vmem:[#allocation2] sm:$0x1]
      %vm504 = vcmask 64512
      %v505 = vsel %vm504, %v501, 0.0
      %v506 = vsel %vm504, %v502, 0.0
      %v507 = vadd.f32 %v505, %v506
      %v508 = vrot.slane %v507, 4
      %v509 = vadd.f32 %v507, %v508
      %v510 = vrot.slane %v509, 2
      %v511 = vadd.f32 %v509, %v510
      %v512 = vrot.slane %v511, 1
      %v513 = vadd.f32 %v511, %v512
      %v514 = vadd.f32 %v503, %v513
      %vm515 = vcmask 57344
      %516 = vst.msk [vmem:[#allocation2] sm:$0x1] %vm515, %v514
      %p517 = scmp.eq.s32.totalorder %s17, 2
      // Predicated region
      $region49: #{performance_evaluator_forward.3} parent=43 // pred_check
        %p518 = pneg %p517
      $region50: #{performance_evaluator_forward.3} parent=43 // pred_check_branch
        %520 = sbr.rel (%p518) target = $region52
      $region51: #{performance_evaluator_forward.3} parent=43 // pred_region
        %v521 = vld [vmem:[#allocation2] sm:$0x1]
        %v522 = vsel %vm504, %v521, 0.0
        %523 = vst [vmem:[%s6] sm:$0x1] %v522
      $region52: #{performance_evaluator_forward.3} parent=43 // pred_fallthru
        _
      // Predicated region
      $region53: #{performance_evaluator_forward.3} parent=43 // pred_check
        %p524 = pneg %p186
      $region54: #{performance_evaluator_forward.3} parent=43 // pred_check_branch
        %526 = sbr.rel (%p524) target = $region56
      $region55: #{performance_evaluator_forward.3} parent=43 // pred_region
        _
      $region56: #{performance_evaluator_forward.3} parent=43 // pred_fallthru
        _
      // Predicated region
      $region57: #{performance_evaluator_forward.3} parent=43 // pred_check
        %p527 = pneg %p186
      $region58: #{performance_evaluator_forward.3} parent=43 // pred_check_branch
        %529 = sbr.rel (%p527) target = $region60
      $region59: #{performance_evaluator_forward.3} parent=43 // pred_region
        _
      $region60: #{performance_evaluator_forward.3} parent=43 // pred_fallthru
        _
    $region44: #{performance_evaluator_forward.3} parent=5 // pred_fallthru
      _
    %p530 = scmp.le.s32.totalorder 2, %s12
    // Predicated region
    $region61: #{performance_evaluator_forward.3} parent=5 // pred_check
      %p531 = pneg %p530
    $region62: #{performance_evaluator_forward.3} parent=5 // pred_check_branch
      %533 = sbr.rel (%p531) target = $region64
    $region63: #{performance_evaluator_forward.3} parent=5 // pred_region
      %s534 = ssub.s32 %s12, 2
    $region64: #{performance_evaluator_forward.3} parent=5 // pred_fallthru
      _
  $region6: #{performance_evaluator_forward.3} parent=0 // loop_footer
    %s16 = sadd.s32 1, %s12
  $region7: #{performance_evaluator_forward.3} parent=0 // loop_footer_branch
    %11 = sbr.rel target = $region3
  $region8: #{performance_evaluator_forward.3} parent=0 // loop_exit
    _

// kernel: performance_evaluator_forward.2
$region0: #{performance_evaluator_forward.2}
  #allocation0 [shape = 'u32[]', space=smem, size = 0x4, offset = 0x4, fixed_abs, tag = 'smem constant byte address 0x4 - core index']
  #allocation1 [shape = 'u32[144,128]{1,0:T(1,128)}', space=vmem, size = 0x12000, scoped, tag = 'internal scratch']
  #allocation2 [shape = 'f32[4,52]{1,0:T(4,128)}', space=vmem, size = 0x800, scoped, tag = 'scratch operand']
  #allocation3 [shape = 'f32[10,10]{1,0:T(8,128)}', space=vmem, size = 0x2000, scoped, tag = 'scratch operand']
  %s0 = inlined_call_operand.vmem [shape: f32[24,4], index: 0, kind: input, shape index: {}]
  %s1 = inlined_call_operand.vmem [shape: f32[24,17], index: 1, kind: input, shape index: {}]
  %s2 = inlined_call_operand.vmem [shape: f32[24,17], index: 2, kind: input, shape index: {}]
  %s3 = inlined_call_operand.vmem [shape: f32[24,20], index: 3, kind: input, shape index: {}]
  %s4 = inlined_call_operand.vmem [shape: f32[24,13], index: 4, kind: input, shape index: {}]
  %s5 = inlined_call_operand.vmem [shape: f32[24,17], index: 5, kind: input, shape index: {}]
  %s6 = inlined_call_operand.vmem [shape: f32[24,15], index: 6, kind: input, shape index: {}]
  %s7 = inlined_call_operand.vmem [shape: f32[99,168], index: 7, kind: input, shape index: {}]
  %s8 = inlined_call_operand.vmem [shape: f32[1,168], index: 8, kind: input, shape index: {}]
  %s9 = inlined_call_operand.vmem [shape: f32[168,16], index: 9, kind: input, shape index: {}]
  %s10 = inlined_call_operand.vmem [shape: f32[1,16], index: 10, kind: input, shape index: {}]
  %s11 = inlined_call_operand.vmem [shape: f32[99,7], index: 11, kind: input, shape index: {}]
  %s12 = inlined_call_operand.vmem [shape: f32[168,7], index: 12, kind: input, shape index: {}]
  %s13 = inlined_call_operand.vmem [shape: f32[16,7], index: 13, kind: input, shape index: {}]
  %s14 = inlined_call_operand.vmem [shape: f32[1,7], index: 14, kind: input, shape index: {}]
  %s15 = inlined_call_operand.vmem [shape: f32[99,10], index: 15, kind: input, shape index: {}]
  %s16 = inlined_call_operand.vmem [shape: f32[16,128], index: 16, kind: output, shape index: {}]
  %s17 = sld [smem:[#allocation0]]
  $region105: #{performance_evaluator_forward.2} parent=0
    _
  %s19 = ssub.s32 1, %s17
  %s20 = scalar_select 0, %s19, %s17
  loop: start=0, step=1, limit=5
  $region2: #{performance_evaluator_forward.2} parent=0 // loop_pre_header
    _
  $region3: #{performance_evaluator_forward.2} parent=0 // loop_header
    %s22 = sphi 0, %s26
    %p23 = scmp.ge.s32.totalorder %s22, 5
    %s32 = sphi 0, %s34
    %s35 = sphi 0, %s32
    %s36 = sphi 0, %s35
    %s52 = sphi 0, %s36
    %s58 = sphi 0, %s60
    %s61 = sphi 0, %s58
    %s62 = sphi 0, %s61
    %s78 = sphi 0, %s62
    %s84 = sphi 0, %s86
    %s87 = sphi 0, %s84
    %s88 = sphi 0, %s87
    %s104 = sphi 0, %s88
    %s110 = sphi 0, %s112
    %s113 = sphi 0, %s110
    %s114 = sphi 0, %s113
    %s130 = sphi 0, %s114
    %s136 = sphi 0, %s138
    %s139 = sphi 0, %s136
    %s140 = sphi 0, %s139
    %s156 = sphi 0, %s140
    %s162 = sphi 0, %s164
    %s165 = sphi 0, %s162
    %s166 = sphi 0, %s165
    %s182 = sphi 0, %s166
    %s188 = sphi 0, %s190
    %s191 = sphi 0, %s188
    %s192 = sphi 0, %s191
    %s208 = sphi 0, %s192
    %s212 = sphi 0, %s212
    %s214 = sphi 0, %s212
    %s215 = sphi 0, %s214
    %s229 = sphi 0, %s215
    %s233 = sphi 0, %s233
    %s235 = sphi 0, %s233
    %s236 = sphi 0, %s235
    %s250 = sphi 0, %s236
    %s254 = sphi 0, %s254
    %s256 = sphi 0, %s254
    %s257 = sphi 0, %s256
    %s271 = sphi 0, %s257
    %s275 = sphi 0, %s275
    %s277 = sphi 0, %s275
    %s278 = sphi 0, %s277
    %s292 = sphi 0, %s278
    %s296 = sphi 0, %s296
    %s298 = sphi 0, %s296
    %s299 = sphi 0, %s298
    %s313 = sphi 0, %s299
    %s317 = sphi 0, %s317
    %s319 = sphi 0, %s317
    %s320 = sphi 0, %s319
    %s334 = sphi 0, %s320
    %s338 = sphi 0, %s338
    %s340 = sphi 0, %s338
    %s341 = sphi 0, %s340
    %s355 = sphi 0, %s341
    %s359 = sphi 0, %s359
    %s361 = sphi 0, %s359
    %s362 = sphi 0, %s361
    %s376 = sphi 0, %s362
    %s380 = sphi 0, %s380
    %s382 = sphi 0, %s380
    %s383 = sphi 0, %s382
    %s397 = sphi 0, %s383
    %s401 = sphi 0, %s401
    %s403 = sphi 0, %s401
    %s404 = sphi 0, %s403
    %s418 = sphi 0, %s404
  $region4: #{performance_evaluator_forward.2} parent=0 // loop_header_branch
    %25 = sbr.rel (%p23) target = $region8
  $region5: #{performance_evaluator_forward.2} parent=0 // loop_body
    %s27 = ssub.s32 %s22, 1
    %s28 = ssub.s32 %s22, 2
    %s29 = sadd.s32 %s22, 1
    %s30 = ssub.s32 %s22, %s29
    %p31 = scmp.eq.s32.totalorder %s30, 0
    %s33 = sadd.s32 %s32, 1
    %s34 = scalar_select %p31, %s32, %s33
    %p37 = pneg %p31
    %p38 = scmp.eq.s32.totalorder %s22, 2
    %p39 = por %p37, %p38
    %p40 = scmp.ne.s32.totalorder %s32, %s35
    %p41 = scmp.eq.s32.totalorder %s22, 0
    %p42 = por %p40, %p41
    %p43 = scmp.ne.s32.totalorder %s32, %s35
    %p44 = scmp.eq.s32.totalorder %s27, 2
    %p45 = por %p43, %p44
    %p46 = scmp.ne.s32.totalorder %s35, %s36
    %p47 = scmp.eq.s32.totalorder %s27, 0
    %p48 = por %p46, %p47
    %p49 = scmp.ne.s32.totalorder %s35, %s36
    %p50 = scmp.eq.s32.totalorder %s28, 2
    %p51 = por %p49, %p50
    %p53 = scmp.ne.s32.totalorder %s36, %s52
    %p54 = scmp.eq.s32.totalorder %s28, 0
    %p55 = por %p53, %p54
    %s56 = ssub.s32 %s22, %s29
    %p57 = scmp.eq.s32.totalorder %s56, 0
    %s59 = sadd.s32 %s58, 1
    %s60 = scalar_select %p57, %s58, %s59
    %p63 = pneg %p57
    %p64 = scmp.eq.s32.totalorder %s22, 2
    %p65 = por %p63, %p64
    %p66 = scmp.ne.s32.totalorder %s58, %s61
    %p67 = scmp.eq.s32.totalorder %s22, 0
    %p68 = por %p66, %p67
    %p69 = scmp.ne.s32.totalorder %s58, %s61
    %p70 = scmp.eq.s32.totalorder %s27, 2
    %p71 = por %p69, %p70
    %p72 = scmp.ne.s32.totalorder %s61, %s62
    %p73 = scmp.eq.s32.totalorder %s27, 0
    %p74 = por %p72, %p73
    %p75 = scmp.ne.s32.totalorder %s61, %s62
    %p76 = scmp.eq.s32.totalorder %s28, 2
    %p77 = por %p75, %p76
    %p79 = scmp.ne.s32.totalorder %s62, %s78
    %p80 = scmp.eq.s32.totalorder %s28, 0
    %p81 = por %p79, %p80
    %s82 = ssub.s32 %s22, %s29
    %p83 = scmp.eq.s32.totalorder %s82, 0
    %s85 = sadd.s32 %s84, 1
    %s86 = scalar_select %p83, %s84, %s85
    %p89 = pneg %p83
    %p90 = scmp.eq.s32.totalorder %s22, 2
    %p91 = por %p89, %p90
    %p92 = scmp.ne.s32.totalorder %s84, %s87
    %p93 = scmp.eq.s32.totalorder %s22, 0
    %p94 = por %p92, %p93
    %p95 = scmp.ne.s32.totalorder %s84, %s87
    %p96 = scmp.eq.s32.totalorder %s27, 2
    %p97 = por %p95, %p96
    %p98 = scmp.ne.s32.totalorder %s87, %s88
    %p99 = scmp.eq.s32.totalorder %s27, 0
    %p100 = por %p98, %p99
    %p101 = scmp.ne.s32.totalorder %s87, %s88
    %p102 = scmp.eq.s32.totalorder %s28, 2
    %p103 = por %p101, %p102
    %p105 = scmp.ne.s32.totalorder %s88, %s104
    %p106 = scmp.eq.s32.totalorder %s28, 0
    %p107 = por %p105, %p106
    %s108 = ssub.s32 %s22, %s29
    %p109 = scmp.eq.s32.totalorder %s108, 0
    %s111 = sadd.s32 %s110, 1
    %s112 = scalar_select %p109, %s110, %s111
    %p115 = pneg %p109
    %p116 = scmp.eq.s32.totalorder %s22, 2
    %p117 = por %p115, %p116
    %p118 = scmp.ne.s32.totalorder %s110, %s113
    %p119 = scmp.eq.s32.totalorder %s22, 0
    %p120 = por %p118, %p119
    %p121 = scmp.ne.s32.totalorder %s110, %s113
    %p122 = scmp.eq.s32.totalorder %s27, 2
    %p123 = por %p121, %p122
    %p124 = scmp.ne.s32.totalorder %s113, %s114
    %p125 = scmp.eq.s32.totalorder %s27, 0
    %p126 = por %p124, %p125
    %p127 = scmp.ne.s32.totalorder %s113, %s114
    %p128 = scmp.eq.s32.totalorder %s28, 2
    %p129 = por %p127, %p128
    %p131 = scmp.ne.s32.totalorder %s114, %s130
    %p132 = scmp.eq.s32.totalorder %s28, 0
    %p133 = por %p131, %p132
    %s134 = ssub.s32 %s22, %s29
    %p135 = scmp.eq.s32.totalorder %s134, 0
    %s137 = sadd.s32 %s136, 1
    %s138 = scalar_select %p135, %s136, %s137
    %p141 = pneg %p135
    %p142 = scmp.eq.s32.totalorder %s22, 2
    %p143 = por %p141, %p142
    %p144 = scmp.ne.s32.totalorder %s136, %s139
    %p145 = scmp.eq.s32.totalorder %s22, 0
    %p146 = por %p144, %p145
    %p147 = scmp.ne.s32.totalorder %s136, %s139
    %p148 = scmp.eq.s32.totalorder %s27, 2
    %p149 = por %p147, %p148
    %p150 = scmp.ne.s32.totalorder %s139, %s140
    %p151 = scmp.eq.s32.totalorder %s27, 0
    %p152 = por %p150, %p151
    %p153 = scmp.ne.s32.totalorder %s139, %s140
    %p154 = scmp.eq.s32.totalorder %s28, 2
    %p155 = por %p153, %p154
    %p157 = scmp.ne.s32.totalorder %s140, %s156
    %p158 = scmp.eq.s32.totalorder %s28, 0
    %p159 = por %p157, %p158
    %s160 = ssub.s32 %s22, %s29
    %p161 = scmp.eq.s32.totalorder %s160, 0
    %s163 = sadd.s32 %s162, 1
    %s164 = scalar_select %p161, %s162, %s163
    %p167 = pneg %p161
    %p168 = scmp.eq.s32.totalorder %s22, 2
    %p169 = por %p167, %p168
    %p170 = scmp.ne.s32.totalorder %s162, %s165
    %p171 = scmp.eq.s32.totalorder %s22, 0
    %p172 = por %p170, %p171
    %p173 = scmp.ne.s32.totalorder %s162, %s165
    %p174 = scmp.eq.s32.totalorder %s27, 2
    %p175 = por %p173, %p174
    %p176 = scmp.ne.s32.totalorder %s165, %s166
    %p177 = scmp.eq.s32.totalorder %s27, 0
    %p178 = por %p176, %p177
    %p179 = scmp.ne.s32.totalorder %s165, %s166
    %p180 = scmp.eq.s32.totalorder %s28, 2
    %p181 = por %p179, %p180
    %p183 = scmp.ne.s32.totalorder %s166, %s182
    %p184 = scmp.eq.s32.totalorder %s28, 0
    %p185 = por %p183, %p184
    %s186 = ssub.s32 %s22, %s29
    %p187 = scmp.eq.s32.totalorder %s186, 0
    %s189 = sadd.s32 %s188, 1
    %s190 = scalar_select %p187, %s188, %s189
    %p193 = pneg %p187
    %p194 = scmp.eq.s32.totalorder %s22, 2
    %p195 = por %p193, %p194
    %p196 = scmp.ne.s32.totalorder %s188, %s191
    %p197 = scmp.eq.s32.totalorder %s22, 0
    %p198 = por %p196, %p197
    %p199 = scmp.ne.s32.totalorder %s188, %s191
    %p200 = scmp.eq.s32.totalorder %s27, 2
    %p201 = por %p199, %p200
    %p202 = scmp.ne.s32.totalorder %s191, %s192
    %p203 = scmp.eq.s32.totalorder %s27, 0
    %p204 = por %p202, %p203
    %p205 = scmp.ne.s32.totalorder %s191, %s192
    %p206 = scmp.eq.s32.totalorder %s28, 2
    %p207 = por %p205, %p206
    %p209 = scmp.ne.s32.totalorder %s192, %s208
    %p210 = scmp.eq.s32.totalorder %s28, 0
    %p211 = por %p209, %p210
    %s213 = sadd.s32 %s212, 1
    %p216 = scmp.eq.s32.totalorder %s22, 2
    %p217 = scmp.ne.s32.totalorder %s212, %s214
    %p218 = scmp.eq.s32.totalorder %s22, 0
    %p219 = por %p217, %p218
    %p220 = scmp.ne.s32.totalorder %s212, %s214
    %p221 = scmp.eq.s32.totalorder %s27, 2
    %p222 = por %p220, %p221
    %p223 = scmp.ne.s32.totalorder %s214, %s215
    %p224 = scmp.eq.s32.totalorder %s27, 0
    %p225 = por %p223, %p224
    %p226 = scmp.ne.s32.totalorder %s214, %s215
    %p227 = scmp.eq.s32.totalorder %s28, 2
    %p228 = por %p226, %p227
    %p230 = scmp.ne.s32.totalorder %s215, %s229
    %p231 = scmp.eq.s32.totalorder %s28, 0
    %p232 = por %p230, %p231
    %s234 = sadd.s32 %s233, 1
    %p237 = scmp.eq.s32.totalorder %s22, 2
    %p238 = scmp.ne.s32.totalorder %s233, %s235
    %p239 = scmp.eq.s32.totalorder %s22, 0
    %p240 = por %p238, %p239
    %p241 = scmp.ne.s32.totalorder %s233, %s235
    %p242 = scmp.eq.s32.totalorder %s27, 2
    %p243 = por %p241, %p242
    %p244 = scmp.ne.s32.totalorder %s235, %s236
    %p245 = scmp.eq.s32.totalorder %s27, 0
    %p246 = por %p244, %p245
    %p247 = scmp.ne.s32.totalorder %s235, %s236
    %p248 = scmp.eq.s32.totalorder %s28, 2
    %p249 = por %p247, %p248
    %p251 = scmp.ne.s32.totalorder %s236, %s250
    %p252 = scmp.eq.s32.totalorder %s28, 0
    %p253 = por %p251, %p252
    %s255 = sadd.s32 %s254, 1
    %p258 = scmp.eq.s32.totalorder %s22, 2
    %p259 = scmp.ne.s32.totalorder %s254, %s256
    %p260 = scmp.eq.s32.totalorder %s22, 0
    %p261 = por %p259, %p260
    %p262 = scmp.ne.s32.totalorder %s254, %s256
    %p263 = scmp.eq.s32.totalorder %s27, 2
    %p264 = por %p262, %p263
    %p265 = scmp.ne.s32.totalorder %s256, %s257
    %p266 = scmp.eq.s32.totalorder %s27, 0
    %p267 = por %p265, %p266
    %p268 = scmp.ne.s32.totalorder %s256, %s257
    %p269 = scmp.eq.s32.totalorder %s28, 2
    %p270 = por %p268, %p269
    %p272 = scmp.ne.s32.totalorder %s257, %s271
    %p273 = scmp.eq.s32.totalorder %s28, 0
    %p274 = por %p272, %p273
    %s276 = sadd.s32 %s275, 1
    %p279 = scmp.eq.s32.totalorder %s22, 2
    %p280 = scmp.ne.s32.totalorder %s275, %s277
    %p281 = scmp.eq.s32.totalorder %s22, 0
    %p282 = por %p280, %p281
    %p283 = scmp.ne.s32.totalorder %s275, %s277
    %p284 = scmp.eq.s32.totalorder %s27, 2
    %p285 = por %p283, %p284
    %p286 = scmp.ne.s32.totalorder %s277, %s278
    %p287 = scmp.eq.s32.totalorder %s27, 0
    %p288 = por %p286, %p287
    %p289 = scmp.ne.s32.totalorder %s277, %s278
    %p290 = scmp.eq.s32.totalorder %s28, 2
    %p291 = por %p289, %p290
    %p293 = scmp.ne.s32.totalorder %s278, %s292
    %p294 = scmp.eq.s32.totalorder %s28, 0
    %p295 = por %p293, %p294
    %s297 = sadd.s32 %s296, 1
    %p300 = scmp.eq.s32.totalorder %s22, 2
    %p301 = scmp.ne.s32.totalorder %s296, %s298
    %p302 = scmp.eq.s32.totalorder %s22, 0
    %p303 = por %p301, %p302
    %p304 = scmp.ne.s32.totalorder %s296, %s298
    %p305 = scmp.eq.s32.totalorder %s27, 2
    %p306 = por %p304, %p305
    %p307 = scmp.ne.s32.totalorder %s298, %s299
    %p308 = scmp.eq.s32.totalorder %s27, 0
    %p309 = por %p307, %p308
    %p310 = scmp.ne.s32.totalorder %s298, %s299
    %p311 = scmp.eq.s32.totalorder %s28, 2
    %p312 = por %p310, %p311
    %p314 = scmp.ne.s32.totalorder %s299, %s313
    %p315 = scmp.eq.s32.totalorder %s28, 0
    %p316 = por %p314, %p315
    %s318 = sadd.s32 %s317, 1
    %p321 = scmp.eq.s32.totalorder %s22, 2
    %p322 = scmp.ne.s32.totalorder %s317, %s319
    %p323 = scmp.eq.s32.totalorder %s22, 0
    %p324 = por %p322, %p323
    %p325 = scmp.ne.s32.totalorder %s317, %s319
    %p326 = scmp.eq.s32.totalorder %s27, 2
    %p327 = por %p325, %p326
    %p328 = scmp.ne.s32.totalorder %s319, %s320
    %p329 = scmp.eq.s32.totalorder %s27, 0
    %p330 = por %p328, %p329
    %p331 = scmp.ne.s32.totalorder %s319, %s320
    %p332 = scmp.eq.s32.totalorder %s28, 2
    %p333 = por %p331, %p332
    %p335 = scmp.ne.s32.totalorder %s320, %s334
    %p336 = scmp.eq.s32.totalorder %s28, 0
    %p337 = por %p335, %p336
    %s339 = sadd.s32 %s338, 1
    %p342 = scmp.eq.s32.totalorder %s22, 2
    %p343 = scmp.ne.s32.totalorder %s338, %s340
    %p344 = scmp.eq.s32.totalorder %s22, 0
    %p345 = por %p343, %p344
    %p346 = scmp.ne.s32.totalorder %s338, %s340
    %p347 = scmp.eq.s32.totalorder %s27, 2
    %p348 = por %p346, %p347
    %p349 = scmp.ne.s32.totalorder %s340, %s341
    %p350 = scmp.eq.s32.totalorder %s27, 0
    %p351 = por %p349, %p350
    %p352 = scmp.ne.s32.totalorder %s340, %s341
    %p353 = scmp.eq.s32.totalorder %s28, 2
    %p354 = por %p352, %p353
    %p356 = scmp.ne.s32.totalorder %s341, %s355
    %p357 = scmp.eq.s32.totalorder %s28, 0
    %p358 = por %p356, %p357
    %s360 = sadd.s32 %s359, 1
    %p363 = scmp.eq.s32.totalorder %s22, 2
    %p364 = scmp.ne.s32.totalorder %s359, %s361
    %p365 = scmp.eq.s32.totalorder %s22, 0
    %p366 = por %p364, %p365
    %p367 = scmp.ne.s32.totalorder %s359, %s361
    %p368 = scmp.eq.s32.totalorder %s27, 2
    %p369 = por %p367, %p368
    %p370 = scmp.ne.s32.totalorder %s361, %s362
    %p371 = scmp.eq.s32.totalorder %s27, 0
    %p372 = por %p370, %p371
    %p373 = scmp.ne.s32.totalorder %s361, %s362
    %p374 = scmp.eq.s32.totalorder %s28, 2
    %p375 = por %p373, %p374
    %p377 = scmp.ne.s32.totalorder %s362, %s376
    %p378 = scmp.eq.s32.totalorder %s28, 0
    %p379 = por %p377, %p378
    %s381 = sadd.s32 %s380, 1
    %p384 = scmp.eq.s32.totalorder %s22, 2
    %p385 = scmp.ne.s32.totalorder %s380, %s382
    %p386 = scmp.eq.s32.totalorder %s22, 0
    %p387 = por %p385, %p386
    %p388 = scmp.ne.s32.totalorder %s380, %s382
    %p389 = scmp.eq.s32.totalorder %s27, 2
    %p390 = por %p388, %p389
    %p391 = scmp.ne.s32.totalorder %s382, %s383
    %p392 = scmp.eq.s32.totalorder %s27, 0
    %p393 = por %p391, %p392
    %p394 = scmp.ne.s32.totalorder %s382, %s383
    %p395 = scmp.eq.s32.totalorder %s28, 2
    %p396 = por %p394, %p395
    %p398 = scmp.ne.s32.totalorder %s383, %s397
    %p399 = scmp.eq.s32.totalorder %s28, 0
    %p400 = por %p398, %p399
    %s402 = sadd.s32 %s401, 1
    %p405 = scmp.eq.s32.totalorder %s22, 2
    %p406 = scmp.ne.s32.totalorder %s401, %s403
    %p407 = scmp.eq.s32.totalorder %s22, 0
    %p408 = por %p406, %p407
    %p409 = scmp.ne.s32.totalorder %s401, %s403
    %p410 = scmp.eq.s32.totalorder %s27, 2
    %p411 = por %p409, %p410
    %p412 = scmp.ne.s32.totalorder %s403, %s404
    %p413 = scmp.eq.s32.totalorder %s27, 0
    %p414 = por %p412, %p413
    %p415 = scmp.ne.s32.totalorder %s403, %s404
    %p416 = scmp.eq.s32.totalorder %s28, 2
    %p417 = por %p415, %p416
    %p419 = scmp.ne.s32.totalorder %s404, %s418
    %p420 = scmp.eq.s32.totalorder %s28, 0
    %p421 = por %p419, %p420
    %p422 = scmp.le.s32.totalorder 1, %s22
    %p423 = scmp.lt.s32.totalorder %s22, 4
    %p424 = pnand %p422, %p423
    %p425 = pneg %p424
    // Predicated region
    $region9: #{performance_evaluator_forward.2} parent=5 // pred_check
      _
    $region10: #{performance_evaluator_forward.2} parent=5 // pred_check_branch
      %427 = sbr.rel (%p424) target = $region12
    $region11: #{performance_evaluator_forward.2} parent=5 // pred_region
      %s428 = ssub.s32 %s22, 1
      // Predicated region
      $region13: #{performance_evaluator_forward.2} parent=11 // pred_check
        %p429 = pneg %p225
      $region14: #{performance_evaluator_forward.2} parent=11 // pred_check_branch
        %431 = sbr.rel (%p429) target = $region16
      $region15: #{performance_evaluator_forward.2} parent=11 // pred_region
        _
      $region16: #{performance_evaluator_forward.2} parent=11 // pred_fallthru
        _
      // Predicated region
      $region17: #{performance_evaluator_forward.2} parent=11 // pred_check
        %p432 = pneg %p246
      $region18: #{performance_evaluator_forward.2} parent=11 // pred_check_branch
        %434 = sbr.rel (%p432) target = $region20
      $region19: #{performance_evaluator_forward.2} parent=11 // pred_region
        _
      $region20: #{performance_evaluator_forward.2} parent=11 // pred_fallthru
        _
      // Predicated region
      $region21: #{performance_evaluator_forward.2} parent=11 // pred_check
        %p435 = pneg %p267
      $region22: #{performance_evaluator_forward.2} parent=11 // pred_check_branch
        %437 = sbr.rel (%p435) target = $region24
      $region23: #{performance_evaluator_forward.2} parent=11 // pred_region
        _
      $region24: #{performance_evaluator_forward.2} parent=11 // pred_fallthru
        _
      // Predicated region
      $region25: #{performance_evaluator_forward.2} parent=11 // pred_check
        %p438 = pneg %p288
      $region26: #{performance_evaluator_forward.2} parent=11 // pred_check_branch
        %440 = sbr.rel (%p438) target = $region28
      $region27: #{performance_evaluator_forward.2} parent=11 // pred_region
        _
      $region28: #{performance_evaluator_forward.2} parent=11 // pred_fallthru
        _
      // Predicated region
      $region29: #{performance_evaluator_forward.2} parent=11 // pred_check
        %p441 = pneg %p309
      $region30: #{performance_evaluator_forward.2} parent=11 // pred_check_branch
        %443 = sbr.rel (%p441) target = $region32
      $region31: #{performance_evaluator_forward.2} parent=11 // pred_region
        _
      $region32: #{performance_evaluator_forward.2} parent=11 // pred_fallthru
        _
      // Predicated region
      $region33: #{performance_evaluator_forward.2} parent=11 // pred_check
        %p444 = pneg %p330
      $region34: #{performance_evaluator_forward.2} parent=11 // pred_check_branch
        %446 = sbr.rel (%p444) target = $region36
      $region35: #{performance_evaluator_forward.2} parent=11 // pred_region
        _
      $region36: #{performance_evaluator_forward.2} parent=11 // pred_fallthru
        _
      // Predicated region
      $region37: #{performance_evaluator_forward.2} parent=11 // pred_check
        %p447 = pneg %p351
      $region38: #{performance_evaluator_forward.2} parent=11 // pred_check_branch
        %449 = sbr.rel (%p447) target = $region40
      $region39: #{performance_evaluator_forward.2} parent=11 // pred_region
        _
      $region40: #{performance_evaluator_forward.2} parent=11 // pred_fallthru
        _
      // Predicated region
      $region41: #{performance_evaluator_forward.2} parent=11 // pred_check
        %p450 = pneg %p372
      $region42: #{performance_evaluator_forward.2} parent=11 // pred_check_branch
        %452 = sbr.rel (%p450) target = $region44
      $region43: #{performance_evaluator_forward.2} parent=11 // pred_region
        _
      $region44: #{performance_evaluator_forward.2} parent=11 // pred_fallthru
        _
      // Predicated region
      $region45: #{performance_evaluator_forward.2} parent=11 // pred_check
        %p453 = pneg %p393
      $region46: #{performance_evaluator_forward.2} parent=11 // pred_check_branch
        %455 = sbr.rel (%p453) target = $region48
      $region47: #{performance_evaluator_forward.2} parent=11 // pred_region
        _
      $region48: #{performance_evaluator_forward.2} parent=11 // pred_fallthru
        _
    $region12: #{performance_evaluator_forward.2} parent=5 // pred_fallthru
      _
    %p456 = scmp.lt.s32.totalorder %s22, 3
    // Predicated region
    $region49: #{performance_evaluator_forward.2} parent=5 // pred_check
      %p457 = pneg %p456
    $region50: #{performance_evaluator_forward.2} parent=5 // pred_check_branch
      %459 = sbr.rel (%p457) target = $region52
    $region51: #{performance_evaluator_forward.2} parent=5 // pred_region
      // Predicated region
      $region53: #{performance_evaluator_forward.2} parent=51 // pred_check
        %p460 = pneg %p42
      $region54: #{performance_evaluator_forward.2} parent=51 // pred_check_branch
        %462 = sbr.rel (%p460) target = $region56
      $region55: #{performance_evaluator_forward.2} parent=51 // pred_region
        %p463 = scmp.lt.s32.totalorder %s22, 2
        %s464 = scalar_select %p463, %s22, 2
        %s465 = smul.addr %s464, 8
        %s466 = scalar_lea.vmem %s0, %s465
      $region56: #{performance_evaluator_forward.2} parent=51 // pred_fallthru
        _
      // Predicated region
      $region57: #{performance_evaluator_forward.2} parent=51 // pred_check
        %p467 = pneg %p68
      $region58: #{performance_evaluator_forward.2} parent=51 // pred_check_branch
        %469 = sbr.rel (%p467) target = $region60
      $region59: #{performance_evaluator_forward.2} parent=51 // pred_region
        %p470 = scmp.lt.s32.totalorder %s22, 2
        %s471 = scalar_select %p470, %s22, 2
        %s472 = smul.addr %s471, 8
        %s473 = scalar_lea.vmem %s1, %s472
      $region60: #{performance_evaluator_forward.2} parent=51 // pred_fallthru
        _
      // Predicated region
      $region61: #{performance_evaluator_forward.2} parent=51 // pred_check
        %p474 = pneg %p94
      $region62: #{performance_evaluator_forward.2} parent=51 // pred_check_branch
        %476 = sbr.rel (%p474) target = $region64
      $region63: #{performance_evaluator_forward.2} parent=51 // pred_region
        %p477 = scmp.lt.s32.totalorder %s22, 2
        %s478 = scalar_select %p477, %s22, 2
        %s479 = smul.addr %s478, 8
        %s480 = scalar_lea.vmem %s2, %s479
      $region64: #{performance_evaluator_forward.2} parent=51 // pred_fallthru
        _
      // Predicated region
      $region65: #{performance_evaluator_forward.2} parent=51 // pred_check
        %p481 = pneg %p120
      $region66: #{performance_evaluator_forward.2} parent=51 // pred_check_branch
        %483 = sbr.rel (%p481) target = $region68
      $region67: #{performance_evaluator_forward.2} parent=51 // pred_region
        %p484 = scmp.lt.s32.totalorder %s22, 2
        %s485 = scalar_select %p484, %s22, 2
        %s486 = smul.addr %s485, 8
        %s487 = scalar_lea.vmem %s3, %s486
      $region68: #{performance_evaluator_forward.2} parent=51 // pred_fallthru
        _
      // Predicated region
      $region69: #{performance_evaluator_forward.2} parent=51 // pred_check
        %p488 = pneg %p146
      $region70: #{performance_evaluator_forward.2} parent=51 // pred_check_branch
        %490 = sbr.rel (%p488) target = $region72
      $region71: #{performance_evaluator_forward.2} parent=51 // pred_region
        %p491 = scmp.lt.s32.totalorder %s22, 2
        %s492 = scalar_select %p491, %s22, 2
        %s493 = smul.addr %s492, 8
        %s494 = scalar_lea.vmem %s4, %s493
      $region72: #{performance_evaluator_forward.2} parent=51 // pred_fallthru
        _
      // Predicated region
      $region73: #{performance_evaluator_forward.2} parent=51 // pred_check
        %p495 = pneg %p172
      $region74: #{performance_evaluator_forward.2} parent=51 // pred_check_branch
        %497 = sbr.rel (%p495) target = $region76
      $region75: #{performance_evaluator_forward.2} parent=51 // pred_region
        %p498 = scmp.lt.s32.totalorder %s22, 2
        %s499 = scalar_select %p498, %s22, 2
        %s500 = smul.addr %s499, 8
        %s501 = scalar_lea.vmem %s5, %s500
      $region76: #{performance_evaluator_forward.2} parent=51 // pred_fallthru
        _
      // Predicated region
      $region77: #{performance_evaluator_forward.2} parent=51 // pred_check
        %p502 = pneg %p198
      $region78: #{performance_evaluator_forward.2} parent=51 // pred_check_branch
        %504 = sbr.rel (%p502) target = $region80
      $region79: #{performance_evaluator_forward.2} parent=51 // pred_region
        %p505 = scmp.lt.s32.totalorder %s22, 2
        %s506 = scalar_select %p505, %s22, 2
        %s507 = smul.addr %s506, 8
        %s508 = scalar_lea.vmem %s6, %s507
      $region80: #{performance_evaluator_forward.2} parent=51 // pred_fallthru
        _
    $region52: #{performance_evaluator_forward.2} parent=5 // pred_fallthru
      _
    %p509 = scmp.le.s32.totalorder 1, %s22
    %p510 = scmp.lt.s32.totalorder %s22, 4
    %p511 = pnand %p509, %p510
    %p512 = pneg %p511
    // Predicated region
    $region81: #{performance_evaluator_forward.2} parent=5 // pred_check
      _
    $region82: #{performance_evaluator_forward.2} parent=5 // pred_check_branch
      %514 = sbr.rel (%p511) target = $region84
    $region83: #{performance_evaluator_forward.2} parent=5 // pred_region
      %s515 = ssub.s32 %s22, 1
      %p516 = scmp.lt.s32.totalorder %s27, 2
      %s517 = scalar_select %p516, %s27, 2
      %s518 = smul.addr %s517, 8
      %s519 = scalar_lea.vmem %s0, %s518
      %p520 = pneg %p48
      %p521 = pneg %p45
      %p522 = scmp.lt.s32.totalorder %s27, 2
      %s523 = scalar_select %p522, %s27, 2
      %s524 = smul.addr %s523, 8
      %s525 = scalar_lea.vmem %s1, %s524
      %p526 = pneg %p74
      %p527 = pneg %p71
      %p528 = scmp.lt.s32.totalorder %s27, 2
      %s529 = scalar_select %p528, %s27, 2
      %s530 = smul.addr %s529, 8
      %s531 = scalar_lea.vmem %s2, %s530
      %p532 = pneg %p100
      %p533 = pneg %p97
      %p534 = scmp.lt.s32.totalorder %s27, 2
      %s535 = scalar_select %p534, %s27, 2
      %s536 = smul.addr %s535, 8
      %s537 = scalar_lea.vmem %s3, %s536
      %p538 = pneg %p126
      %p539 = pneg %p123
      %p540 = scmp.lt.s32.totalorder %s27, 2
      %s541 = scalar_select %p540, %s27, 2
      %s542 = smul.addr %s541, 8
      %s543 = scalar_lea.vmem %s4, %s542
      %p544 = pneg %p152
      %p545 = pneg %p149
      %p546 = scmp.lt.s32.totalorder %s27, 2
      %s547 = scalar_select %p546, %s27, 2
      %s548 = smul.addr %s547, 8
      %s549 = scalar_lea.vmem %s5, %s548
      %p550 = pneg %p178
      %p551 = pneg %p175
      %p552 = scmp.lt.s32.totalorder %s27, 2
      %s553 = scalar_select %p552, %s27, 2
      %s554 = smul.addr %s553, 8
      %s555 = scalar_lea.vmem %s6, %s554
      %p556 = pneg %p204
      %p557 = pneg %p201
      %p558 = pneg %p225
      %p559 = pneg %p222
      %p560 = pneg %p246
      %p561 = pneg %p243
      %p562 = pneg %p267
      %p563 = pneg %p264
      %p564 = pneg %p288
      %p565 = pneg %p285
      %p566 = pneg %p309
      %p567 = pneg %p306
      %p568 = pneg %p330
      %p569 = pneg %p327
      %p570 = pneg %p351
      %p571 = pneg %p348
      %p572 = pneg %p372
      %p573 = pneg %p369
      %p574 = pneg %p393
      %p575 = pneg %p390
      %p576 = pneg %p414
      %p577 = pneg %p411
      %p578 = scmp.lt.s32.totalorder %s27, 2
      %s579 = scalar_select %p578, %s27, 2
      %s580 = smul.addr %s579, 8
      %s581 = scalar_lea.vmem %s0, %s580
      %p582 = scmp.lt.s32.totalorder %s27, 2
      %s583 = scalar_select %p582, %s27, 2
      %s584 = smul.addr %s583, 8
      %s585 = scalar_lea.vmem %s1, %s584
      %p586 = scmp.lt.s32.totalorder %s27, 2
      %s587 = scalar_select %p586, %s27, 2
      %s588 = smul.addr %s587, 8
      %s589 = scalar_lea.vmem %s2, %s588
      %p590 = scmp.lt.s32.totalorder %s27, 2
      %s591 = scalar_select %p590, %s27, 2
      %s592 = smul.addr %s591, 8
      %s593 = scalar_lea.vmem %s3, %s592
      %p594 = scmp.lt.s32.totalorder %s27, 2
      %s595 = scalar_select %p594, %s27, 2
      %s596 = smul.addr %s595, 8
      %s597 = scalar_lea.vmem %s4, %s596
      %p598 = scmp.lt.s32.totalorder %s27, 2
      %s599 = scalar_select %p598, %s27, 2
      %s600 = smul.addr %s599, 8
      %s601 = scalar_lea.vmem %s5, %s600
      %p602 = scmp.lt.s32.totalorder %s27, 2
      %s603 = scalar_select %p602, %s27, 2
      %s604 = smul.addr %s603, 8
      %s605 = scalar_lea.vmem %s6, %s604
      %p606 = scmp.eq.s32.totalorder %s27, 0
      // Predicated region
      $region85: #{performance_evaluator_forward.2} parent=83 // pred_check
        %p607 = pneg %p606
      $region86: #{performance_evaluator_forward.2} parent=83 // pred_check_branch
        %609 = sbr.rel (%p607) target = $region88
      $region87: #{performance_evaluator_forward.2} parent=83 // pred_region
        %vm610 = vcmask 420864
        %611 = vst.msk [vmem:[#allocation2] sm:$0xf] %vm610, 0.0
        %vm612 = vcmask 80896
        %613 = vst.msk [vmem:[#allocation3] sm:$0xff] %vm612, 0.0
        %vm614 = vcmask 74752
        %615 = vst.msk [vmem:[#allocation3 + $0x8] sm:$0x3] %vm614, 0.0
      $region88: #{performance_evaluator_forward.2} parent=83 // pred_fallthru
        _
      %v616 = vld [vmem:[%s585] sm:$0xff]
      %v617 = vld [vmem:[%s589] sm:$0xff]
      %v618 = vld [vmem:[%s593] sm:$0xff]
      %v619 = vld [vmem:[%s597] sm:$0xff]
      %v620 = vld [vmem:[%s601] sm:$0xff]
      %v621 = vld [vmem:[%s605] sm:$0xff]
      %v622 = vld [vmem:[%s581] sm:$0xff]
      %624 = vrot.lane.b32.xlu0 %v617, 17
      %v625 = vpop.permute.xlu0 %624
      %628 = vrot.lane.b32.xlu0 %v618, 34
      %v629 = vpop.permute.xlu0 %628
      %632 = vrot.lane.b32.xlu0 %v619, 54
      %v633 = vpop.permute.xlu0 %632
      %636 = vrot.lane.b32.xlu0 %v620, 67
      %v637 = vpop.permute.xlu0 %636
      %640 = vrot.lane.b32.xlu0 %v621, 84
      %v641 = vpop.permute.xlu0 %640
      %vm643 = vcmask 138240
      %v644 = vsel %vm643, %v616, %v625
      %vm645 = vcmask 277504
      %v646 = vsel %vm645, %v644, %v629
      %vm647 = vcmask 441344
      %v648 = vsel %vm647, %v646, %v633
      %vm649 = vcmask 547840
      %v650 = vsel %vm649, %v648, %v637
      %vm651 = vcmask 687104
      %v652 = vsel %vm651, %v650, %v641
      %s653 = smul.u32 %s27, 8
      %v654 = vlaneseq
      %v655 = vshrl.u32 %v654, 7
      %v656 = vstv %s653
      %v657 = vadd.s32 %v656, %v655
      %vm658 = vcmp.lt.s32.totalorder %v657, 20
      %v659 = vsel %vm658, 1, 0
      %v660 = vcvt.s32.f32 %v659
      %v661 = vlaneseq
      %v662 = vand.u32 %v661, 127
      %v663 = vcvt.s32.f32 %v662
      %vm664 = vcmask 31744
      %v665 = vsel %vm664, %v622, -inf
      %666 = vmax.xlane.f32.xlu0 %v665
      %v667 = vpop.xlane.xlu0 %666
      %vm668 = vcmp.ge.f32.partialorder %v622, %v667
      %v669 = vsel %vm668, %v663, 4.0
      %v670 = vsel %vm664, %v669, inf
      %671 = vmin.xlane.f32.xlu0 %v670
      %v672 = vpop.xlane.xlu0 %671
      %vm673 = vcmp.eq.f32.partialorder %v663, %v672
      %v674 = vsel %vm673, 1, 0
      %v675 = vcvt.s32.f32 %v674
      %v676 = vmul.f32 %v675, %v660
      %v677 = vld [vmem:[%s7] sm:$0xff]
      %v678 = vld [vmem:[%s7 + $0x8] sm:$0xff]
      %v679 = vld [vmem:[%s7 + $0x10] sm:$0xff]
      %v680 = vld [vmem:[%s7 + $0x18] sm:$0xff]
      %v681 = vld [vmem:[%s7 + $0x20] sm:$0xff]
      %v682 = vld [vmem:[%s7 + $0x28] sm:$0xff]
      %v683 = vld [vmem:[%s7 + $0x30] sm:$0xff]
      %v684 = vld [vmem:[%s7 + $0x38] sm:$0xff]
      %v685 = vld [vmem:[%s7 + $0x40] sm:$0xff]
      %v686 = vld [vmem:[%s7 + $0x48] sm:$0xff]
      %v687 = vld [vmem:[%s7 + $0x50] sm:$0xff]
      %v688 = vld [vmem:[%s7 + $0x58] sm:$0xff]
      %v689 = vld [vmem:[%s7 + $0x60] sm:$0xff]
      %v690 = vld [vmem:[%s7 + $0x68] sm:$0xff]
      %v691 = vld [vmem:[%s7 + $0x70] sm:$0xff]
      %v692 = vld [vmem:[%s7 + $0x78] sm:$0xff]
      %v693 = vld [vmem:[%s7 + $0x80] sm:$0xff]
      %v694 = vld [vmem:[%s7 + $0x88] sm:$0xff]
      %v695 = vld [vmem:[%s7 + $0x90] sm:$0xff]
      %v696 = vld [vmem:[%s7 + $0x98] sm:$0xff]
      %v697 = vld [vmem:[%s7 + $0xa0] sm:$0xff]
      %v698 = vld [vmem:[%s7 + $0xa8] sm:$0xff]
      %v699 = vld [vmem:[%s7 + $0xb0] sm:$0xff]
      %v700 = vld [vmem:[%s7 + $0xb8] sm:$0xff]
      %v701 = vld [vmem:[%s7 + $0xc0] sm:$0x7]
      %v702 = vld [vmem:[%s7 + $0xc8] sm:$0x7]
      %v703 = vld [vmem:[%s8] sm:$0x3]
      %v705 = vlaneseq
      %v706 = vshrl.u32 %v705, 7
      %v707 = vsub.s32 0, %v706
      %v708 = vrot.slane %v703, %v707
      %v709 = vlaneseq
      %v710 = vshrl.u32 %v709, 7
      %v711 = vsub.s32 1, %v710
      %v712 = vrot.slane %v703, %v711
      %vm715 = vcmask 809984
      %v717 = vsel %vm715, %v652, 0
      %vm719 = vcmask 1042432
      %v721 = vsel %vm719, %v701, 0
      %v724 = vsel %vm719, %v702, 0
      %726 = vmatprep.subr.mxu0 0.0
      %727 = vmatpush1.msra.mxu0 0.0
      %728 = vmatprep.subr.mxu0 0.0
      %729 = vmatpush1.msra.mxu0 0.0
      %730 = vmatprep.subr.mxu0 0.0
      %731 = vmatpush1.msra.mxu0 0.0
      %732 = vmatprep.subr.mxu0 %v724
      %733 = vmatpush1.msra.mxu0 %v721
      %734 = vmatprep.subr.mxu0 %v700
      %735 = vmatpush1.msra.mxu0 %v699
      %736 = vmatprep.subr.mxu0 %v698
      %737 = vmatpush1.msra.mxu0 %v697
      %738 = vmatprep.subr.mxu0 %v696
      %739 = vmatpush1.msra.mxu0 %v695
      %740 = vmatprep.subr.mxu0 %v694
      %741 = vmatpush1.msra.mxu0 %v693
      %742 = vmatprep.subr.mxu0 %v692
      %743 = vmatpush1.msra.mxu0 %v691
      %744 = vmatprep.subr.mxu0 %v690
      %745 = vmatpush1.msra.mxu0 %v689
      %746 = vmatprep.subr.mxu0 %v688
      %747 = vmatpush1.msra.mxu0 %v687
      %748 = vmatprep.subr.mxu0 %v686
      %749 = vmatpush1.msra.mxu0 %v685
      %750 = vmatprep.subr.mxu0 %v684
      %751 = vmatpush1.msra.mxu0 %v683
      %752 = vmatprep.subr.mxu0 %v682
      %753 = vmatpush1.msra.mxu0 %v681
      %754 = vmatprep.subr.mxu0 %v680
      %755 = vmatpush1.msra.mxu0 %v679
      %756 = vmatprep.subr.mxu0 %v678
      %757 = vmatpush1.msra.mxu0 %v677
      %758 = vmatprep.subr.mxu0 0.0
      %759 = vmatpush2.msra.mxu0 0.0
      %760 = vmatprep.subr.mxu0 0.0
      %761 = vmatpush2.msra.mxu0 0.0
      %762 = vmatprep.subr.mxu0 0.0
      %763 = vmatpush2.msra.mxu0 0.0
      %764 = vmatprep.subr.mxu0 0.0
      %765 = vmatpush2.msra.mxu0 0.0
      %766 = vmatprep.subr.mxu0 0.0
      %767 = vmatpush2.msra.mxu0 0.0
      %768 = vmatprep.subr.mxu0 0.0
      %769 = vmatpush2.msra.mxu0 0.0
      %770 = vmatprep.subr.mxu0 0.0
      %771 = vmatpush2.msra.mxu0 0.0
      %772 = vmatprep.subr.mxu0 0.0
      %773 = vmatpush2.msra.mxu0 0.0
      %774 = vmatprep.subr.mxu0 0.0
      %775 = vmatpush2.msra.mxu0 0.0
      %776 = vmatprep.subr.mxu0 0.0
      %777 = vmatpush2.msra.mxu0 0.0
      %778 = vmatprep.subr.mxu0 0.0
      %779 = vmatpush2.msra.mxu0 0.0
      %780 = vmatprep.subr.mxu0 0.0
      %781 = vmatpush2.msra.mxu0 0.0
      %782 = vmatprep.subr.mxu0 0.0
      %783 = vmatpush2.msra.mxu0 0.0
      %784 = vmatprep.subr.mxu0 0.0
      %785 = vmatpush2.msra.mxu0 0.0
      %786 = vmatprep.subr.mxu0 0.0
      %787 = vmatpush2.msra.mxu0 0.0
      %788 = vmatprep.subr.mxu0 0.0
      %789 = vmatpush2.msra.mxu0 0.0
      %790 = vmatprep.mubr.f32.mxu0 0.0
      %791 = vmatmul.mubr.f32.gmra.mxu0 %v717
      %v792 = vpop.f32.mrf.mxu0
      %v793 = vadd.f32 %v708, %v792
      %v794 = vpop.f32.mrf.mxu0
      %v795 = vadd.f32 %v712, %v794
      %796 = vdwg.mxu0
      %v797 = vmax.f32 %v793, 0.0
      %v798 = vmax.f32 %v795, 0.0
      %v799 = vld [vmem:[%s9] sm:$0xff]
      %v800 = vld [vmem:[%s9 + $0x8] sm:$0xff]
      %v801 = vld [vmem:[%s9 + $0x10] sm:$0xff]
      %v802 = vld [vmem:[%s9 + $0x18] sm:$0xff]
      %v803 = vld [vmem:[%s9 + $0x20] sm:$0xff]
      %v804 = vld [vmem:[%s9 + $0x28] sm:$0xff]
      %v805 = vld [vmem:[%s9 + $0x30] sm:$0xff]
      %v806 = vld [vmem:[%s9 + $0x38] sm:$0xff]
      %v807 = vld [vmem:[%s9 + $0x40] sm:$0xff]
      %v808 = vld [vmem:[%s9 + $0x48] sm:$0xff]
      %v809 = vld [vmem:[%s9 + $0x50] sm:$0xff]
      %v810 = vld [vmem:[%s9 + $0x58] sm:$0xff]
      %v811 = vld [vmem:[%s9 + $0x60] sm:$0xff]
      %v812 = vld [vmem:[%s9 + $0x68] sm:$0xff]
      %v813 = vld [vmem:[%s9 + $0x70] sm:$0xff]
      %v814 = vld [vmem:[%s9 + $0x78] sm:$0xff]
      %v815 = vld [vmem:[%s9 + $0x80] sm:$0xff]
      %v816 = vld [vmem:[%s9 + $0x88] sm:$0xff]
      %v817 = vld [vmem:[%s9 + $0x90] sm:$0xff]
      %v818 = vld [vmem:[%s9 + $0x98] sm:$0xff]
      %v819 = vld [vmem:[%s9 + $0xa0] sm:$0xff]
      %v820 = vld [vmem:[%s10] sm:$0x1]
      %v822 = vlaneseq
      %v823 = vshrl.u32 %v822, 7
      %v824 = vsub.s32 0, %v823
      %v825 = vrot.slane %v820, %v824
      %vm827 = vcmask 326656
      %v829 = vsel %vm827, %v798, 0
      %831 = vmatprep.subr.mxu0 0.0
      %832 = vmatpush1.msra.mxu0 %v814
      %833 = vmatprep.subr.mxu0 0.0
      %834 = vmatpush1.msra.mxu0 %v813
      %835 = vmatprep.subr.mxu0 0.0
      %836 = vmatpush1.msra.mxu0 %v812
      %837 = vmatprep.subr.mxu0 0.0
      %838 = vmatpush1.msra.mxu0 %v811
      %839 = vmatprep.subr.mxu0 0.0
      %840 = vmatpush1.msra.mxu0 %v810
      %841 = vmatprep.subr.mxu0 0.0
      %842 = vmatpush1.msra.mxu0 %v809
      %843 = vmatprep.subr.mxu0 0.0
      %844 = vmatpush1.msra.mxu0 %v808
      %845 = vmatprep.subr.mxu0 0.0
      %846 = vmatpush1.msra.mxu0 %v807
      %847 = vmatprep.subr.mxu0 0.0
      %848 = vmatpush1.msra.mxu0 %v806
      %849 = vmatprep.subr.mxu0 0.0
      %850 = vmatpush1.msra.mxu0 %v805
      %851 = vmatprep.subr.mxu0 0.0
      %852 = vmatpush1.msra.mxu0 %v804
      %853 = vmatprep.subr.mxu0 0.0
      %854 = vmatpush1.msra.mxu0 %v803
      %855 = vmatprep.subr.mxu0 0.0
      %856 = vmatpush1.msra.mxu0 %v802
      %857 = vmatprep.subr.mxu0 0.0
      %858 = vmatpush1.msra.mxu0 %v801
      %859 = vmatprep.subr.mxu0 0.0
      %860 = vmatpush1.msra.mxu0 %v800
      %861 = vmatprep.subr.mxu0 0.0
      %862 = vmatpush1.msra.mxu0 %v799
      %863 = vmatprep.subr.mxu0 0.0
      %864 = vmatpush2.msra.mxu0 0.0
      %865 = vmatprep.subr.mxu0 0.0
      %866 = vmatpush2.msra.mxu0 0.0
      %867 = vmatprep.subr.mxu0 0.0
      %868 = vmatpush2.msra.mxu0 0.0
      %869 = vmatprep.subr.mxu0 0.0
      %870 = vmatpush2.msra.mxu0 0.0
      %871 = vmatprep.subr.mxu0 0.0
      %872 = vmatpush2.msra.mxu0 0.0
      %873 = vmatprep.subr.mxu0 0.0
      %874 = vmatpush2.msra.mxu0 0.0
      %875 = vmatprep.subr.mxu0 0.0
      %876 = vmatpush2.msra.mxu0 0.0
      %877 = vmatprep.subr.mxu0 0.0
      %878 = vmatpush2.msra.mxu0 0.0
      %879 = vmatprep.subr.mxu0 0.0
      %880 = vmatpush2.msra.mxu0 0.0
      %881 = vmatprep.subr.mxu0 0.0
      %882 = vmatpush2.msra.mxu0 0.0
      %883 = vmatprep.subr.mxu0 0.0
      %884 = vmatpush2.msra.mxu0 0.0
      %885 = vmatprep.subr.mxu0 0.0
      %886 = vmatpush2.msra.mxu0 %v819
      %887 = vmatprep.subr.mxu0 0.0
      %888 = vmatpush2.msra.mxu0 %v818
      %889 = vmatprep.subr.mxu0 0.0
      %890 = vmatpush2.msra.mxu0 %v817
      %891 = vmatprep.subr.mxu0 0.0
      %892 = vmatpush2.msra.mxu0 %v816
      %893 = vmatprep.subr.mxu0 0.0
      %894 = vmatpush2.msra.mxu0 %v815
      %895 = vmatprep.mubr.f32.mxu0 %v829
      %896 = vmatmul.mubr.f32.gmra.mxu0 %v797
      %v897 = vpop.f32.mrf.mxu0
      %v898 = vadd.f32 %v825, %v897
      %v899 = vpop.f32.mrf.mxu0
      %900 = vdwg.mxu0
      %v901 = vmax.f32 %v898, 0.0
      %v902 = vld [vmem:[%s11] sm:$0xff]
      %v903 = vld [vmem:[%s11 + $0x8] sm:$0xff]
      %v904 = vld [vmem:[%s11 + $0x10] sm:$0xff]
      %v905 = vld [vmem:[%s11 + $0x18] sm:$0xff]
      %v906 = vld [vmem:[%s11 + $0x20] sm:$0xff]
      %v907 = vld [vmem:[%s11 + $0x28] sm:$0xff]
      %v908 = vld [vmem:[%s11 + $0x30] sm:$0xff]
      %v909 = vld [vmem:[%s11 + $0x38] sm:$0xff]
      %v910 = vld [vmem:[%s11 + $0x40] sm:$0xff]
      %v911 = vld [vmem:[%s11 + $0x48] sm:$0xff]
      %v912 = vld [vmem:[%s11 + $0x50] sm:$0xff]
      %v913 = vld [vmem:[%s11 + $0x58] sm:$0xff]
      %v914 = vld [vmem:[%s11 + $0x60] sm:$0x7]
      %v915 = vld [vmem:[%s12] sm:$0xff]
      %v916 = vld [vmem:[%s12 + $0x8] sm:$0xff]
      %v917 = vld [vmem:[%s12 + $0x10] sm:$0xff]
      %v918 = vld [vmem:[%s12 + $0x18] sm:$0xff]
      %v919 = vld [vmem:[%s12 + $0x20] sm:$0xff]
      %v920 = vld [vmem:[%s12 + $0x28] sm:$0xff]
      %v921 = vld [vmem:[%s12 + $0x30] sm:$0xff]
      %v922 = vld [vmem:[%s12 + $0x38] sm:$0xff]
      %v923 = vld [vmem:[%s12 + $0x40] sm:$0xff]
      %v924 = vld [vmem:[%s12 + $0x48] sm:$0xff]
      %v925 = vld [vmem:[%s12 + $0x50] sm:$0xff]
      %v926 = vld [vmem:[%s12 + $0x58] sm:$0xff]
      %v927 = vld [vmem:[%s12 + $0x60] sm:$0xff]
      %v928 = vld [vmem:[%s12 + $0x68] sm:$0xff]
      %v929 = vld [vmem:[%s12 + $0x70] sm:$0xff]
      %v930 = vld [vmem:[%s12 + $0x78] sm:$0xff]
      %v931 = vld [vmem:[%s12 + $0x80] sm:$0xff]
      %v932 = vld [vmem:[%s12 + $0x88] sm:$0xff]
      %v933 = vld [vmem:[%s12 + $0x90] sm:$0xff]
      %v934 = vld [vmem:[%s12 + $0x98] sm:$0xff]
      %v935 = vld [vmem:[%s12 + $0xa0] sm:$0xff]
      %936 = vmatprep.subr.mxu0 0.0
      %937 = vmatpush1.msra.mxu0 %v930
      %938 = vmatprep.subr.mxu0 0.0
      %939 = vmatpush1.msra.mxu0 %v929
      %940 = vmatprep.subr.mxu0 0.0
      %941 = vmatpush1.msra.mxu0 %v928
      %942 = vmatprep.subr.mxu0 0.0
      %943 = vmatpush1.msra.mxu0 %v927
      %944 = vmatprep.subr.mxu0 0.0
      %945 = vmatpush1.msra.mxu0 %v926
      %946 = vmatprep.subr.mxu0 0.0
      %947 = vmatpush1.msra.mxu0 %v925
      %948 = vmatprep.subr.mxu0 0.0
      %949 = vmatpush1.msra.mxu0 %v924
      %950 = vmatprep.subr.mxu0 0.0
      %951 = vmatpush1.msra.mxu0 %v923
      %952 = vmatprep.subr.mxu0 0.0
      %953 = vmatpush1.msra.mxu0 %v922
      %954 = vmatprep.subr.mxu0 0.0
      %955 = vmatpush1.msra.mxu0 %v921
      %956 = vmatprep.subr.mxu0 0.0
      %957 = vmatpush1.msra.mxu0 %v920
      %958 = vmatprep.subr.mxu0 0.0
      %959 = vmatpush1.msra.mxu0 %v919
      %960 = vmatprep.subr.mxu0 0.0
      %961 = vmatpush1.msra.mxu0 %v918
      %962 = vmatprep.subr.mxu0 0.0
      %963 = vmatpush1.msra.mxu0 %v917
      %964 = vmatprep.subr.mxu0 0.0
      %965 = vmatpush1.msra.mxu0 %v916
      %966 = vmatprep.subr.mxu0 0.0
      %967 = vmatpush1.msra.mxu0 %v915
      %968 = vmatprep.subr.mxu0 0.0
      %969 = vmatpush2.msra.mxu0 0.0
      %970 = vmatprep.subr.mxu0 0.0
      %971 = vmatpush2.msra.mxu0 0.0
      %972 = vmatprep.subr.mxu0 0.0
      %973 = vmatpush2.msra.mxu0 0.0
      %974 = vmatprep.subr.mxu0 0.0
      %975 = vmatpush2.msra.mxu0 0.0
      %976 = vmatprep.subr.mxu0 0.0
      %977 = vmatpush2.msra.mxu0 0.0
      %978 = vmatprep.subr.mxu0 0.0
      %979 = vmatpush2.msra.mxu0 0.0
      %980 = vmatprep.subr.mxu0 0.0
      %981 = vmatpush2.msra.mxu0 0.0
      %982 = vmatprep.subr.mxu0 0.0
      %983 = vmatpush2.msra.mxu0 0.0
      %984 = vmatprep.subr.mxu0 0.0
      %985 = vmatpush2.msra.mxu0 0.0
      %986 = vmatprep.subr.mxu0 0.0
      %987 = vmatpush2.msra.mxu0 0.0
      %988 = vmatprep.subr.mxu0 0.0
      %989 = vmatpush2.msra.mxu0 0.0
      %990 = vmatprep.subr.mxu0 0.0
      %991 = vmatpush2.msra.mxu0 %v935
      %992 = vmatprep.subr.mxu0 0.0
      %993 = vmatpush2.msra.mxu0 %v934
      %994 = vmatprep.subr.mxu0 0.0
      %995 = vmatpush2.msra.mxu0 %v933
      %996 = vmatprep.subr.mxu0 0.0
      %997 = vmatpush2.msra.mxu0 %v932
      %998 = vmatprep.subr.mxu0 0.0
      %999 = vmatpush2.msra.mxu0 %v931
      %1000 = vmatprep.mubr.f32.mxu0 %v829
      %1001 = vmatmul.mubr.f32.gmra.mxu0 %v797
      %v1002 = vpop.f32.mrf.mxu0
      %v1003 = vadd.f32 0.0, %v1002
      %v1004 = vpop.f32.mrf.mxu0
      %1005 = vdwg.mxu0
      %v1007 = vsel %vm719, %v914, 0
      %1009 = vmatprep.subr.mxu0 0.0
      %1010 = vmatpush1.msra.mxu0 0.0
      %1011 = vmatprep.subr.mxu0 0.0
      %1012 = vmatpush1.msra.mxu0 0.0
      %1013 = vmatprep.subr.mxu0 0.0
      %1014 = vmatpush1.msra.mxu0 0.0
      %1015 = vmatprep.subr.mxu0 0.0
      %1016 = vmatpush1.msra.mxu0 %v1007
      %1017 = vmatprep.subr.mxu0 0.0
      %1018 = vmatpush1.msra.mxu0 %v913
      %1019 = vmatprep.subr.mxu0 0.0
      %1020 = vmatpush1.msra.mxu0 %v912
      %1021 = vmatprep.subr.mxu0 0.0
      %1022 = vmatpush1.msra.mxu0 %v911
      %1023 = vmatprep.subr.mxu0 0.0
      %1024 = vmatpush1.msra.mxu0 %v910
      %1025 = vmatprep.subr.mxu0 0.0
      %1026 = vmatpush1.msra.mxu0 %v909
      %1027 = vmatprep.subr.mxu0 0.0
      %1028 = vmatpush1.msra.mxu0 %v908
      %1029 = vmatprep.subr.mxu0 0.0
      %1030 = vmatpush1.msra.mxu0 %v907
      %1031 = vmatprep.subr.mxu0 0.0
      %1032 = vmatpush1.msra.mxu0 %v906
      %1033 = vmatprep.subr.mxu0 0.0
      %1034 = vmatpush1.msra.mxu0 %v905
      %1035 = vmatprep.subr.mxu0 0.0
      %1036 = vmatpush1.msra.mxu0 %v904
      %1037 = vmatprep.subr.mxu0 0.0
      %1038 = vmatpush1.msra.mxu0 %v903
      %1039 = vmatprep.subr.mxu0 0.0
      %1040 = vmatpush1.msra.mxu0 %v902
      %1041 = vmatprep.subr.mxu0 0.0
      %1042 = vmatpush2.msra.mxu0 0.0
      %1043 = vmatprep.subr.mxu0 0.0
      %1044 = vmatpush2.msra.mxu0 0.0
      %1045 = vmatprep.subr.mxu0 0.0
      %1046 = vmatpush2.msra.mxu0 0.0
      %1047 = vmatprep.subr.mxu0 0.0
      %1048 = vmatpush2.msra.mxu0 0.0
      %1049 = vmatprep.subr.mxu0 0.0
      %1050 = vmatpush2.msra.mxu0 0.0
      %1051 = vmatprep.subr.mxu0 0.0
      %1052 = vmatpush2.msra.mxu0 0.0
      %1053 = vmatprep.subr.mxu0 0.0
      %1054 = vmatpush2.msra.mxu0 0.0
      %1055 = vmatprep.subr.mxu0 0.0
      %1056 = vmatpush2.msra.mxu0 0.0
      %1057 = vmatprep.subr.mxu0 0.0
      %1058 = vmatpush2.msra.mxu0 0.0
      %1059 = vmatprep.subr.mxu0 0.0
      %1060 = vmatpush2.msra.mxu0 0.0
      %1061 = vmatprep.subr.mxu0 0.0
      %1062 = vmatpush2.msra.mxu0 0.0
      %1063 = vmatprep.subr.mxu0 0.0
      %1064 = vmatpush2.msra.mxu0 0.0
      %1065 = vmatprep.subr.mxu0 0.0
      %1066 = vmatpush2.msra.mxu0 0.0
      %1067 = vmatprep.subr.mxu0 0.0
      %1068 = vmatpush2.msra.mxu0 0.0
      %1069 = vmatprep.subr.mxu0 0.0
      %1070 = vmatpush2.msra.mxu0 0.0
      %1071 = vmatprep.subr.mxu0 0.0
      %1072 = vmatpush2.msra.mxu0 0.0
      %1073 = vmatprep.mubr.f32.mxu0 0.0
      %1074 = vmatmul.mubr.f32.gmra.mxu0 %v717
      %v1075 = vpop.f32.mrf.mxu0
      %v1076 = vadd.f32 %v1003, %v1075
      %v1077 = vpop.f32.mrf.mxu0
      %1078 = vdwg.mxu0
      %v1079 = vld [vmem:[%s13] sm:$0xff]
      %v1080 = vld [vmem:[%s13 + $0x8] sm:$0xff]
      %vm1081 = vcmask 130048
      %v1083 = vsel %vm1081, %v901, 0
      %1085 = vmatprep.subr.mxu0 0.0
      %1086 = vmatpush1.msra.mxu0 0.0
      %1087 = vmatprep.subr.mxu0 0.0
      %1088 = vmatpush1.msra.mxu0 0.0
      %1089 = vmatprep.subr.mxu0 0.0
      %1090 = vmatpush1.msra.mxu0 0.0
      %1091 = vmatprep.subr.mxu0 0.0
      %1092 = vmatpush1.msra.mxu0 0.0
      %1093 = vmatprep.subr.mxu0 0.0
      %1094 = vmatpush1.msra.mxu0 0.0
      %1095 = vmatprep.subr.mxu0 0.0
      %1096 = vmatpush1.msra.mxu0 0.0
      %1097 = vmatprep.subr.mxu0 0.0
      %1098 = vmatpush1.msra.mxu0 0.0
      %1099 = vmatprep.subr.mxu0 0.0
      %1100 = vmatpush1.msra.mxu0 0.0
      %1101 = vmatprep.subr.mxu0 0.0
      %1102 = vmatpush1.msra.mxu0 0.0
      %1103 = vmatprep.subr.mxu0 0.0
      %1104 = vmatpush1.msra.mxu0 0.0
      %1105 = vmatprep.subr.mxu0 0.0
      %1106 = vmatpush1.msra.mxu0 0.0
      %1107 = vmatprep.subr.mxu0 0.0
      %1108 = vmatpush1.msra.mxu0 0.0
      %1109 = vmatprep.subr.mxu0 0.0
      %1110 = vmatpush1.msra.mxu0 0.0
      %1111 = vmatprep.subr.mxu0 0.0
      %1112 = vmatpush1.msra.mxu0 0.0
      %1113 = vmatprep.subr.mxu0 0.0
      %1114 = vmatpush1.msra.mxu0 %v1080
      %1115 = vmatprep.subr.mxu0 0.0
      %1116 = vmatpush1.msra.mxu0 %v1079
      %1117 = vmatprep.subr.mxu0 0.0
      %1118 = vmatpush2.msra.mxu0 0.0
      %1119 = vmatprep.subr.mxu0 0.0
      %1120 = vmatpush2.msra.mxu0 0.0
      %1121 = vmatprep.subr.mxu0 0.0
      %1122 = vmatpush2.msra.mxu0 0.0
      %1123 = vmatprep.subr.mxu0 0.0
      %1124 = vmatpush2.msra.mxu0 0.0
      %1125 = vmatprep.subr.mxu0 0.0
      %1126 = vmatpush2.msra.mxu0 0.0
      %1127 = vmatprep.subr.mxu0 0.0
      %1128 = vmatpush2.msra.mxu0 0.0
      %1129 = vmatprep.subr.mxu0 0.0
      %1130 = vmatpush2.msra.mxu0 0.0
      %1131 = vmatprep.subr.mxu0 0.0
      %1132 = vmatpush2.msra.mxu0 0.0
      %1133 = vmatprep.subr.mxu0 0.0
      %1134 = vmatpush2.msra.mxu0 0.0
      %1135 = vmatprep.subr.mxu0 0.0
      %1136 = vmatpush2.msra.mxu0 0.0
      %1137 = vmatprep.subr.mxu0 0.0
      %1138 = vmatpush2.msra.mxu0 0.0
      %1139 = vmatprep.subr.mxu0 0.0
      %1140 = vmatpush2.msra.mxu0 0.0
      %1141 = vmatprep.subr.mxu0 0.0
      %1142 = vmatpush2.msra.mxu0 0.0
      %1143 = vmatprep.subr.mxu0 0.0
      %1144 = vmatpush2.msra.mxu0 0.0
      %1145 = vmatprep.subr.mxu0 0.0
      %1146 = vmatpush2.msra.mxu0 0.0
      %1147 = vmatprep.subr.mxu0 0.0
      %1148 = vmatpush2.msra.mxu0 0.0
      %1149 = vmatprep.mubr.f32.mxu0 0.0
      %1150 = vmatmul.mubr.f32.gmra.mxu0 %v1083
      %v1151 = vpop.f32.mrf.mxu0
      %v1152 = vadd.f32 0.0, %v1151
      %v1153 = vpop.f32.mrf.mxu0
      %1154 = vdwg.mxu0
      %v1155 = vadd.f32 %v1076, %v1152
      %v1156 = vld [vmem:[%s14] sm:$0x1]
      %v1158 = vlaneseq
      %v1159 = vshrl.u32 %v1158, 7
      %v1160 = vsub.s32 0, %v1159
      %v1161 = vrot.slane %v1156, %v1160
      %v1163 = vadd.f32 %v1155, %v1161
      %vm1164 = vcmp.lt.s32.totalorder %v662, 6
      %v1165 = vxor.u32 %v1163, 2147483648
      %v1166 = vmul.f32 %v1165, 1.442695
      %v1167 = vpow.pop %v1166
      %v1168 = vadd.f32 %v1167, 1.0
      %v1169 = vrcp.pop %v1168
      %v1170 = vmul.f32 1.0, %v1169
      %v1171 = vsel %vm1164, %v1170, %v1163
      %v1172 = vld [vmem:[%s15] sm:$0xff]
      %v1173 = vld [vmem:[%s15 + $0x8] sm:$0xff]
      %v1174 = vld [vmem:[%s15 + $0x10] sm:$0xff]
      %v1175 = vld [vmem:[%s15 + $0x18] sm:$0xff]
      %v1176 = vld [vmem:[%s15 + $0x20] sm:$0xff]
      %v1177 = vld [vmem:[%s15 + $0x28] sm:$0xff]
      %v1178 = vld [vmem:[%s15 + $0x30] sm:$0xff]
      %v1179 = vld [vmem:[%s15 + $0x38] sm:$0xff]
      %v1180 = vld [vmem:[%s15 + $0x40] sm:$0xff]
      %v1181 = vld [vmem:[%s15 + $0x48] sm:$0xff]
      %v1182 = vld [vmem:[%s15 + $0x50] sm:$0xff]
      %v1183 = vld [vmem:[%s15 + $0x58] sm:$0xff]
      %v1184 = vld [vmem:[%s15 + $0x60] sm:$0x7]
      %v1186 = vsel %vm719, %v1184, 0
      %1188 = vmatprep.subr.mxu0 0.0
      %1189 = vmatpush1.msra.mxu0 0.0
      %1190 = vmatprep.subr.mxu0 0.0
      %1191 = vmatpush1.msra.mxu0 0.0
      %1192 = vmatprep.subr.mxu0 0.0
      %1193 = vmatpush1.msra.mxu0 0.0
      %1194 = vmatprep.subr.mxu0 0.0
      %1195 = vmatpush1.msra.mxu0 %v1186
      %1196 = vmatprep.subr.mxu0 0.0
      %1197 = vmatpush1.msra.mxu0 %v1183
      %1198 = vmatprep.subr.mxu0 0.0
      %1199 = vmatpush1.msra.mxu0 %v1182
      %1200 = vmatprep.subr.mxu0 0.0
      %1201 = vmatpush1.msra.mxu0 %v1181
      %1202 = vmatprep.subr.mxu0 0.0
      %1203 = vmatpush1.msra.mxu0 %v1180
      %1204 = vmatprep.subr.mxu0 0.0
      %1205 = vmatpush1.msra.mxu0 %v1179
      %1206 = vmatprep.subr.mxu0 0.0
      %1207 = vmatpush1.msra.mxu0 %v1178
      %1208 = vmatprep.subr.mxu0 0.0
      %1209 = vmatpush1.msra.mxu0 %v1177
      %1210 = vmatprep.subr.mxu0 0.0
      %1211 = vmatpush1.msra.mxu0 %v1176
      %1212 = vmatprep.subr.mxu0 0.0
      %1213 = vmatpush1.msra.mxu0 %v1175
      %1214 = vmatprep.subr.mxu0 0.0
      %1215 = vmatpush1.msra.mxu0 %v1174
      %1216 = vmatprep.subr.mxu0 0.0
      %1217 = vmatpush1.msra.mxu0 %v1173
      %1218 = vmatprep.subr.mxu0 0.0
      %1219 = vmatpush1.msra.mxu0 %v1172
      %1220 = vmatprep.subr.mxu0 0.0
      %1221 = vmatpush2.msra.mxu0 0.0
      %1222 = vmatprep.subr.mxu0 0.0
      %1223 = vmatpush2.msra.mxu0 0.0
      %1224 = vmatprep.subr.mxu0 0.0
      %1225 = vmatpush2.msra.mxu0 0.0
      %1226 = vmatprep.subr.mxu0 0.0
      %1227 = vmatpush2.msra.mxu0 0.0
      %1228 = vmatprep.subr.mxu0 0.0
      %1229 = vmatpush2.msra.mxu0 0.0
      %1230 = vmatprep.subr.mxu0 0.0
      %1231 = vmatpush2.msra.mxu0 0.0
      %1232 = vmatprep.subr.mxu0 0.0
      %1233 = vmatpush2.msra.mxu0 0.0
      %1234 = vmatprep.subr.mxu0 0.0
      %1235 = vmatpush2.msra.mxu0 0.0
      %1236 = vmatprep.subr.mxu0 0.0
      %1237 = vmatpush2.msra.mxu0 0.0
      %1238 = vmatprep.subr.mxu0 0.0
      %1239 = vmatpush2.msra.mxu0 0.0
      %1240 = vmatprep.subr.mxu0 0.0
      %1241 = vmatpush2.msra.mxu0 0.0
      %1242 = vmatprep.subr.mxu0 0.0
      %1243 = vmatpush2.msra.mxu0 0.0
      %1244 = vmatprep.subr.mxu0 0.0
      %1245 = vmatpush2.msra.mxu0 0.0
      %1246 = vmatprep.subr.mxu0 0.0
      %1247 = vmatpush2.msra.mxu0 0.0
      %1248 = vmatprep.subr.mxu0 0.0
      %1249 = vmatpush2.msra.mxu0 0.0
      %1250 = vmatprep.subr.mxu0 0.0
      %1251 = vmatpush2.msra.mxu0 0.0
      %1252 = vmatprep.mubr.f32.mxu0 0.0
      %1253 = vmatmul.mubr.f32.gmra.mxu0 %v717
      %v1254 = vpop.f32.mrf.mxu0
      %v1255 = vadd.f32 0.0, %v1254
      %v1256 = vpop.f32.mrf.mxu0
      %1257 = vdwg.mxu0
      %v1258 = vmul.f32 %v620, %v620
      %1260 = vrot.lane.b32.xlu0 %v1255, 1
      %v1261 = vpop.permute.xlu0 %1260
      %1263 = vrot.lane.b32.xlu0 %v620, 11
      %v1264 = vpop.permute.xlu0 %1263
      %1267 = vrot.lane.b32.xlu0 %v1258, 28
      %v1268 = vpop.permute.xlu0 %1267
      %1271 = vrot.lane.b32.xlu0 %v1171, 45
      %v1272 = vpop.permute.xlu0 %1271
      %vm1274 = vcmask 7168
      %v1275 = vsel %vm1274, 1.0, %v1261
      %vm1276 = vcmask 89088
      %v1277 = vsel %vm1276, %v1275, %v1264
      %vm1278 = vcmask 228352
      %v1279 = vsel %vm1278, %v1277, %v1268
      %vm1280 = vcmask 367616
      %v1281 = vsel %vm1280, %v1279, %v1272
      %v1282 = vld [vmem:[#allocation2] sm:$0xf]
      %1283 = vxpose.xlu0.b32.start [1/16] %v676, 128
      %1284 = vxpose.xlu0.b32.cont [2/16] 0.0, 128
      %1285 = vxpose.xlu0.b32.cont [3/16] 0.0, 128
      %1286 = vxpose.xlu0.b32.cont [4/16] 0.0, 128
      %1287 = vxpose.xlu0.b32.cont [5/16] 0.0, 128
      %1288 = vxpose.xlu0.b32.cont [6/16] 0.0, 128
      %1289 = vxpose.xlu0.b32.cont [7/16] 0.0, 128
      %1290 = vxpose.xlu0.b32.cont [8/16] 0.0, 128
      %1291 = vxpose.xlu0.b32.cont [9/16] 0.0, 128
      %1292 = vxpose.xlu0.b32.cont [10/16] 0.0, 128
      %1293 = vxpose.xlu0.b32.cont [11/16] 0.0, 128
      %1294 = vxpose.xlu0.b32.cont [12/16] 0.0, 128
      %1295 = vxpose.xlu0.b32.cont [13/16] 0.0, 128
      %1296 = vxpose.xlu0.b32.cont [14/16] 0.0, 128
      %1297 = vxpose.xlu0.b32.cont [15/16] 0.0, 128
      %1298 = vxpose.xlu0.b32.end [16/16] 0.0, 128
      %v1299 = vpop.trf.xlu0
      %v1300 = vpop.trf.xlu0
      %v1301 = vpop.trf.xlu0
      %v1302 = vpop.trf.xlu0
      %v1303 = vpop.trf.xlu0
      %v1304 = vpop.trf.xlu0
      %v1305 = vpop.trf.xlu0
      %v1306 = vpop.trf.xlu0
      %v1307 = vpop.trf.xlu0
      %v1308 = vpop.trf.xlu0
      %v1309 = vpop.trf.xlu0
      %v1310 = vpop.trf.xlu0
      %v1311 = vpop.trf.xlu0
      %v1312 = vpop.trf.xlu0
      %v1313 = vpop.trf.xlu0
      %v1314 = vpop.trf.xlu0
      %vm1315 = vcmask 64512
      %v1317 = vsel %vm1315, %v1299, 0
      %1319 = vmatprep.subr.mxu0 0.0
      %1320 = vmatpush1.msra.mxu0 0.0
      %1321 = vmatprep.subr.mxu0 0.0
      %1322 = vmatpush1.msra.mxu0 0.0
      %1323 = vmatprep.subr.mxu0 0.0
      %1324 = vmatpush1.msra.mxu0 0.0
      %1325 = vmatprep.subr.mxu0 0.0
      %1326 = vmatpush1.msra.mxu0 0.0
      %1327 = vmatprep.subr.mxu0 0.0
      %1328 = vmatpush1.msra.mxu0 0.0
      %1329 = vmatprep.subr.mxu0 0.0
      %1330 = vmatpush1.msra.mxu0 0.0
      %1331 = vmatprep.subr.mxu0 0.0
      %1332 = vmatpush1.msra.mxu0 0.0
      %1333 = vmatprep.subr.mxu0 0.0
      %1334 = vmatpush1.msra.mxu0 0.0
      %1335 = vmatprep.subr.mxu0 0.0
      %1336 = vmatpush1.msra.mxu0 0.0
      %1337 = vmatprep.subr.mxu0 0.0
      %1338 = vmatpush1.msra.mxu0 0.0
      %1339 = vmatprep.subr.mxu0 0.0
      %1340 = vmatpush1.msra.mxu0 0.0
      %1341 = vmatprep.subr.mxu0 0.0
      %1342 = vmatpush1.msra.mxu0 0.0
      %1343 = vmatprep.subr.mxu0 0.0
      %1344 = vmatpush1.msra.mxu0 0.0
      %1345 = vmatprep.subr.mxu0 0.0
      %1346 = vmatpush1.msra.mxu0 0.0
      %1347 = vmatprep.subr.mxu0 0.0
      %1348 = vmatpush1.msra.mxu0 0.0
      %1349 = vmatprep.subr.mxu0 0.0
      %1350 = vmatpush1.msra.mxu0 %v1281
      %1351 = vmatprep.subr.mxu0 0.0
      %1352 = vmatpush2.msra.mxu0 0.0
      %1353 = vmatprep.subr.mxu0 0.0
      %1354 = vmatpush2.msra.mxu0 0.0
      %1355 = vmatprep.subr.mxu0 0.0
      %1356 = vmatpush2.msra.mxu0 0.0
      %1357 = vmatprep.subr.mxu0 0.0
      %1358 = vmatpush2.msra.mxu0 0.0
      %1359 = vmatprep.subr.mxu0 0.0
      %1360 = vmatpush2.msra.mxu0 0.0
      %1361 = vmatprep.subr.mxu0 0.0
      %1362 = vmatpush2.msra.mxu0 0.0
      %1363 = vmatprep.subr.mxu0 0.0
      %1364 = vmatpush2.msra.mxu0 0.0
      %1365 = vmatprep.subr.mxu0 0.0
      %1366 = vmatpush2.msra.mxu0 0.0
      %1367 = vmatprep.subr.mxu0 0.0
      %1368 = vmatpush2.msra.mxu0 0.0
      %1369 = vmatprep.subr.mxu0 0.0
      %1370 = vmatpush2.msra.mxu0 0.0
      %1371 = vmatprep.subr.mxu0 0.0
      %1372 = vmatpush2.msra.mxu0 0.0
      %1373 = vmatprep.subr.mxu0 0.0
      %1374 = vmatpush2.msra.mxu0 0.0
      %1375 = vmatprep.subr.mxu0 0.0
      %1376 = vmatpush2.msra.mxu0 0.0
      %1377 = vmatprep.subr.mxu0 0.0
      %1378 = vmatpush2.msra.mxu0 0.0
      %1379 = vmatprep.subr.mxu0 0.0
      %1380 = vmatpush2.msra.mxu0 0.0
      %1381 = vmatprep.subr.mxu0 0.0
      %1382 = vmatpush2.msra.mxu0 0.0
      %1383 = vmatprep.mubr.f32.mxu0 0.0
      %1384 = vmatmul.mubr.f32.gmra.mxu0 %v1317
      %v1385 = vpop.f32.mrf.mxu0
      %v1386 = vadd.f32 0.0, %v1385
      %v1387 = vpop.f32.mrf.mxu0
      %1388 = vdwg.mxu0
      %v1389 = vadd.f32 %v1282, %v1386
      %vm1390 = vcmask 420864
      %1391 = vst.msk [vmem:[#allocation2] sm:$0xf] %vm1390, %v1389
      %v1392 = vmul.f32 %v1255, %v660
      %v1393 = vld [vmem:[#allocation3] sm:$0xff]
      %v1394 = vld [vmem:[#allocation3 + $0x8] sm:$0x3]
      %1395 = vxpose.xlu0.b32.start [1/16] %v1392, 128
      %1396 = vxpose.xlu0.b32.cont [2/16] 0.0, 128
      %1397 = vxpose.xlu0.b32.cont [3/16] 0.0, 128
      %1398 = vxpose.xlu0.b32.cont [4/16] 0.0, 128
      %1399 = vxpose.xlu0.b32.cont [5/16] 0.0, 128
      %1400 = vxpose.xlu0.b32.cont [6/16] 0.0, 128
      %1401 = vxpose.xlu0.b32.cont [7/16] 0.0, 128
      %1402 = vxpose.xlu0.b32.cont [8/16] 0.0, 128
      %1403 = vxpose.xlu0.b32.cont [9/16] 0.0, 128
      %1404 = vxpose.xlu0.b32.cont [10/16] 0.0, 128
      %1405 = vxpose.xlu0.b32.cont [11/16] 0.0, 128
      %1406 = vxpose.xlu0.b32.cont [12/16] 0.0, 128
      %1407 = vxpose.xlu0.b32.cont [13/16] 0.0, 128
      %1408 = vxpose.xlu0.b32.cont [14/16] 0.0, 128
      %1409 = vxpose.xlu0.b32.cont [15/16] 0.0, 128
      %1410 = vxpose.xlu0.b32.end [16/16] 0.0, 128
      %v1411 = vpop.trf.xlu0
      %v1412 = vpop.trf.xlu0
      %v1413 = vpop.trf.xlu0
      %v1414 = vpop.trf.xlu0
      %v1415 = vpop.trf.xlu0
      %v1416 = vpop.trf.xlu0
      %v1417 = vpop.trf.xlu0
      %v1418 = vpop.trf.xlu0
      %v1419 = vpop.trf.xlu0
      %v1420 = vpop.trf.xlu0
      %v1421 = vpop.trf.xlu0
      %v1422 = vpop.trf.xlu0
      %v1423 = vpop.trf.xlu0
      %v1424 = vpop.trf.xlu0
      %v1425 = vpop.trf.xlu0
      %v1426 = vpop.trf.xlu0
      %v1428 = vsel %vm1315, %v1411, 0
      %v1431 = vsel %vm1315, %v1412, 0
      %1433 = vmatprep.subr.mxu0 0.0
      %1434 = vmatpush1.msra.mxu0 0.0
      %1435 = vmatprep.subr.mxu0 0.0
      %1436 = vmatpush1.msra.mxu0 0.0
      %1437 = vmatprep.subr.mxu0 0.0
      %1438 = vmatpush1.msra.mxu0 0.0
      %1439 = vmatprep.subr.mxu0 0.0
      %1440 = vmatpush1.msra.mxu0 0.0
      %1441 = vmatprep.subr.mxu0 0.0
      %1442 = vmatpush1.msra.mxu0 0.0
      %1443 = vmatprep.subr.mxu0 0.0
      %1444 = vmatpush1.msra.mxu0 0.0
      %1445 = vmatprep.subr.mxu0 0.0
      %1446 = vmatpush1.msra.mxu0 0.0
      %1447 = vmatprep.subr.mxu0 0.0
      %1448 = vmatpush1.msra.mxu0 0.0
      %1449 = vmatprep.subr.mxu0 0.0
      %1450 = vmatpush1.msra.mxu0 0.0
      %1451 = vmatprep.subr.mxu0 0.0
      %1452 = vmatpush1.msra.mxu0 0.0
      %1453 = vmatprep.subr.mxu0 0.0
      %1454 = vmatpush1.msra.mxu0 0.0
      %1455 = vmatprep.subr.mxu0 0.0
      %1456 = vmatpush1.msra.mxu0 0.0
      %1457 = vmatprep.subr.mxu0 0.0
      %1458 = vmatpush1.msra.mxu0 0.0
      %1459 = vmatprep.subr.mxu0 0.0
      %1460 = vmatpush1.msra.mxu0 0.0
      %1461 = vmatprep.subr.mxu0 0.0
      %1462 = vmatpush1.msra.mxu0 0.0
      %1463 = vmatprep.subr.mxu0 0.0
      %1464 = vmatpush1.msra.mxu0 %v1392
      %1465 = vmatprep.subr.mxu0 0.0
      %1466 = vmatpush2.msra.mxu0 0.0
      %1467 = vmatprep.subr.mxu0 0.0
      %1468 = vmatpush2.msra.mxu0 0.0
      %1469 = vmatprep.subr.mxu0 0.0
      %1470 = vmatpush2.msra.mxu0 0.0
      %1471 = vmatprep.subr.mxu0 0.0
      %1472 = vmatpush2.msra.mxu0 0.0
      %1473 = vmatprep.subr.mxu0 0.0
      %1474 = vmatpush2.msra.mxu0 0.0
      %1475 = vmatprep.subr.mxu0 0.0
      %1476 = vmatpush2.msra.mxu0 0.0
      %1477 = vmatprep.subr.mxu0 0.0
      %1478 = vmatpush2.msra.mxu0 0.0
      %1479 = vmatprep.subr.mxu0 0.0
      %1480 = vmatpush2.msra.mxu0 0.0
      %1481 = vmatprep.subr.mxu0 0.0
      %1482 = vmatpush2.msra.mxu0 0.0
      %1483 = vmatprep.subr.mxu0 0.0
      %1484 = vmatpush2.msra.mxu0 0.0
      %1485 = vmatprep.subr.mxu0 0.0
      %1486 = vmatpush2.msra.mxu0 0.0
      %1487 = vmatprep.subr.mxu0 0.0
      %1488 = vmatpush2.msra.mxu0 0.0
      %1489 = vmatprep.subr.mxu0 0.0
      %1490 = vmatpush2.msra.mxu0 0.0
      %1491 = vmatprep.subr.mxu0 0.0
      %1492 = vmatpush2.msra.mxu0 0.0
      %1493 = vmatprep.subr.mxu0 0.0
      %1494 = vmatpush2.msra.mxu0 0.0
      %1495 = vmatprep.subr.mxu0 0.0
      %1496 = vmatpush2.msra.mxu0 0.0
      %1497 = vmatprep.mubr.f32.mxu0 0.0
      %1498 = vmatmul.mubr.f32.gmra.mxu0 %v1428
      %v1499 = vpop.f32.mrf.mxu0
      %v1500 = vadd.f32 0.0, %v1499
      %v1501 = vpop.f32.mrf.mxu0
      %1502 = vmatprep.mubr.f32.mxu0 0.0
      %1503 = vmatmul.mubr.f32.gmra.mxu0 %v1431
      %v1504 = vpop.f32.mrf.mxu0
      %v1505 = vadd.f32 0.0, %v1504
      %v1506 = vpop.f32.mrf.mxu0
      %1507 = vdwg.mxu0
      %v1508 = vadd.f32 %v1393, %v1500
      %v1509 = vadd.f32 %v1394, %v1505
      %vm1510 = vcmask 80896
      %1511 = vst.msk [vmem:[#allocation3] sm:$0xff] %vm1510, %v1508
      %vm1512 = vcmask 74752
      %1513 = vst.msk [vmem:[#allocation3 + $0x8] sm:$0x3] %vm1512, %v1509
      %p1514 = scmp.eq.s32.totalorder %s27, 2
      // Predicated region
      $region89: #{performance_evaluator_forward.2} parent=83 // pred_check
        %p1515 = pneg %p1514
      $region90: #{performance_evaluator_forward.2} parent=83 // pred_check_branch
        %1517 = sbr.rel (%p1515) target = $region92
      $region91: #{performance_evaluator_forward.2} parent=83 // pred_region
        %v1518 = vld [vmem:[#allocation2] sm:$0xf]
        %vm1519 = vcmask 424960
        %v1520 = vsel %vm1519, %v1518, 0.0
        %1521 = vst [vmem:[%s16] sm:$0xf] %v1520
        %v1522 = vld [vmem:[#allocation3] sm:$0xff]
        %v1523 = vld [vmem:[#allocation3 + $0x8] sm:$0x3]
        %v1524 = vsel %vm1510, %v1522, 0.0
        %v1525 = vsel %vm1510, %v1523, 0.0
        %1526 = vst [vmem:[%s16 + $0x4] sm:$0xff] %v1524
        %1527 = vst [vmem:[%s16 + $0xc] sm:$0x3] %v1525
        %1528 = vst [vmem:[%s16 + $0xe] sm:$0x3] 0.0
      $region92: #{performance_evaluator_forward.2} parent=83 // pred_fallthru
        _
      // Predicated region
      $region93: #{performance_evaluator_forward.2} parent=83 // pred_check
        %p1529 = pneg %p411
      $region94: #{performance_evaluator_forward.2} parent=83 // pred_check_branch
        %1531 = sbr.rel (%p1529) target = $region96
      $region95: #{performance_evaluator_forward.2} parent=83 // pred_region
        _
      $region96: #{performance_evaluator_forward.2} parent=83 // pred_fallthru
        _
      // Predicated region
      $region97: #{performance_evaluator_forward.2} parent=83 // pred_check
        %p1532 = pneg %p411
      $region98: #{performance_evaluator_forward.2} parent=83 // pred_check_branch
        %1534 = sbr.rel (%p1532) target = $region100
      $region99: #{performance_evaluator_forward.2} parent=83 // pred_region
        _
      $region100: #{performance_evaluator_forward.2} parent=83 // pred_fallthru
        _
    $region84: #{performance_evaluator_forward.2} parent=5 // pred_fallthru
      _
    %p1535 = scmp.le.s32.totalorder 2, %s22
    // Predicated region
    $region101: #{performance_evaluator_forward.2} parent=5 // pred_check
      %p1536 = pneg %p1535
    $region102: #{performance_evaluator_forward.2} parent=5 // pred_check_branch
      %1538 = sbr.rel (%p1536) target = $region104
    $region103: #{performance_evaluator_forward.2} parent=5 // pred_region
      %s1539 = ssub.s32 %s22, 2
    $region104: #{performance_evaluator_forward.2} parent=5 // pred_fallthru
      _
  $region6: #{performance_evaluator_forward.2} parent=0 // loop_footer
    %s26 = sadd.s32 1, %s22
  $region7: #{performance_evaluator_forward.2} parent=0 // loop_footer_branch
    %21 = sbr.rel target = $region3
  $region8: #{performance_evaluator_forward.2} parent=0 // loop_exit
    _

</llo_original>
